<compile_context>
chip_gen: v7x
topology: tpu7x:2x2x1
jax: 0.10.0
libtpu: 0.0.40
codegen_flags: <defaults>
</compile_context>

<pallas_src>
import functools
import math

import jax
import jax.numpy as jnp
from jax.experimental import pallas as pl
from jax.experimental.pallas import tpu as pltpu


# ---------------------------------------------------------------------------
# In-kernel helpers
# ---------------------------------------------------------------------------
def _layer_norm(x, w, b, eps=1e-5):
    mu = jnp.mean(x, axis=-1, keepdims=True)
    xc = x - mu
    var = jnp.mean(xc * xc, axis=-1, keepdims=True)
    return xc * jax.lax.rsqrt(var + eps) * w + b


def _proj(x_f32, w_ref, b_ref):
    # y = x @ W.T + b   (W in PyTorch (out, in) convention, stored bf16;
    # MXU operands bf16, accumulation f32).
    y = jax.lax.dot_general(
        x_f32.astype(jnp.bfloat16), w_ref[0],
        (((1,), (1,)), ((), ())), preferred_element_type=jnp.float32)
    return y + b_ref[0]


# ---------------------------------------------------------------------------
# Fused kernel: pos-encoding + all encoder layers.
# grid = (num_batch_blocks [parallel], num_layers [arbitrary]).
# ---------------------------------------------------------------------------
def _encoder_kernel(x_ref, pe_ref, mask_ref,
                    wqkv_ref, bqkv_ref, wo_ref, bo_ref, ln1w_ref, ln1b_ref,
                    w1_ref, b1_ref, w2_ref, b2_ref, ln2w_ref, ln2b_ref,
                    o_ref, acc_ref, *,
                    num_head, seq_len, use_pos_enc, pos_scale):
    l = pl.program_id(1)
    S = seq_len
    N, D = acc_ref.shape                  # N = bs * S rows in this batch block
    bs = N // S
    dh = D // num_head

    # --- layer 0: load the input once, apply (scaled) positional encoding and
    #     keep the activation resident in VMEM for all subsequent layers.
    @pl.when(l == 0)
    def _():
        x0 = x_ref[...].astype(jnp.float32)                 # (N, D)
        if use_pos_enc:
            pe = pe_ref[...].astype(jnp.float32)            # (bs, 1, D)
            for b in range(bs):                             # static, bs tiny
                acc_ref[b * S:(b + 1) * S, :] = (
                    x0[b * S:(b + 1) * S, :] * pos_scale + pe[b])
        else:
            acc_ref[...] = x0

    x = acc_ref[...]                                        # (N, D) float32

    # --- fused q,k,v projection (1/sqrt(dh) already folded into q rows).
    qkv = _proj(x, wqkv_ref, bqkv_ref)                      # (N, 3D) f32
    q3 = qkv[:, :D].reshape(bs, S, D)
    k3 = qkv[:, D:2 * D].reshape(bs, S, D)
    v3 = qkv[:, 2 * D:].reshape(bs, S, D)

    mask = mask_ref[...]                                    # (S, S), 0 / -1e30

    # --- attention: sequences batched in a single einsum per head (lane-slice
    #     per head avoids relayouts); one output projection on concat(heads).
    heads = []
    for h in range(num_head):                               # static unroll
        sl = slice(h * dh, (h + 1) * dh)
        qh = q3[:, :, sl].astype(jnp.bfloat16)
        kh = k3[:, :, sl].astype(jnp.bfloat16)
        vh = v3[:, :, sl].astype(jnp.bfloat16)
        s = jnp.einsum('bqd,bkd->bqk', qh, kh,
                       preferred_element_type=jnp.float32) + mask
        s = s - jnp.max(s, axis=-1, keepdims=True)
        p = jnp.exp(s)
        p = p / jnp.sum(p, axis=-1, keepdims=True)
        heads.append(jnp.einsum('bqk,bkd->bqd', p.astype(jnp.bfloat16), vh,
                                preferred_element_type=jnp.float32))
    attn = jnp.concatenate(heads, axis=-1).reshape(N, D)
    attn = _proj(attn, wo_ref, bo_ref)                      # (N, D)

    # --- residual + LayerNorm 1 (dropout == identity in eval mode)
    x1 = _layer_norm(x + attn, ln1w_ref[0], ln1b_ref[0])

    # --- feed-forward: relu(x1 @ W1.T + b1) @ W2.T + b2
    # TODO(synk): if D/dim_feedforward grow, tile the FFN along F with an extra
    # 'arbitrary' reduction axis and budget VMEM (v7x has only 64 MiB/TC).
    h1 = jnp.maximum(_proj(x1, w1_ref, b1_ref), 0.0)
    h2 = _proj(h1, w2_ref, b2_ref)

    # --- residual + LayerNorm 2; keep resident for the next layer.
    x2 = _layer_norm(x1 + h2, ln2w_ref[0], ln2b_ref[0])
    acc_ref[...] = x2

    @pl.when(l == pl.num_programs(1) - 1)
    def _():
        o_ref[...] = x2.astype(o_ref.dtype)


# ---------------------------------------------------------------------------
# Parameter / buffer construction (deterministic) and prep
# ---------------------------------------------------------------------------
_STACK_KEYS = ("wqkv", "bqkv", "wo", "bo", "ln1w", "ln1b",
               "w1", "b1", "w2", "b2", "ln2w", "ln2b")
_BF16_KEYS = ("wqkv", "wo", "w1", "w2")


def make_pos_encoding(max_len, feature_dim):
    pos = jnp.arange(max_len, dtype=jnp.float32)[:, None]
    div = jnp.exp(jnp.arange(0, feature_dim, 2, dtype=jnp.float32)
                  * (-math.log(10000.0) / feature_dim))
    pe = jnp.zeros((max_len, feature_dim), jnp.float32)
    pe = pe.at[:, 0::2].set(jnp.sin(pos * div))
    pe = pe.at[:, 1::2].set(jnp.cos(pos * div))
    return pe[:, None, :]                                   # (max_len, 1, D)


def init_params(key, num_layers, feature_dim, dim_feedforward):
    D, F = feature_dim, dim_feedforward

    def u(k, shape):
        return jax.random.uniform(k, shape, jnp.float32, -0.1, 0.1)

    layers = []
    for layer_idx in range(num_layers):
        ks = jax.random.split(jax.random.fold_in(key, layer_idx), 6)
        layers.append(dict(
            wqkv=u(ks[0], (3 * D, D)),
            bqkv=u(ks[1], (1, 3 * D)),
            wo=u(ks[2], (D, D)),
            bo=u(ks[3], (1, D)),
            ln1w=jnp.ones((1, D), jnp.float32),
            ln1b=jnp.zeros((1, D), jnp.float32),
            w1=u(ks[4], (F, D)),
            b1=jnp.zeros((1, F), jnp.float32),
            w2=u(ks[5], (D, F)),
            b2=jnp.zeros((1, D), jnp.float32),
            ln2w=jnp.ones((1, D), jnp.float32),
            ln2b=jnp.zeros((1, D), jnp.float32),
        ))
    return layers


def prepare_params(layers, feature_dim, num_head):
    """Stack per-layer params on a leading layer axis, fold 1/sqrt(dh) into the
    q rows of in_proj (weight + bias), and cast matmul weights to bf16."""
    D = feature_dim
    scale = 1.0 / math.sqrt(D // num_head)
    stacked = {k: jnp.stack([layer[k] for layer in layers], axis=0)
               for k in _STACK_KEYS}
    stacked["wqkv"] = stacked["wqkv"].at[:, :D, :].multiply(scale)
    stacked["bqkv"] = stacked["bqkv"].at[:, :, :D].multiply(scale)
    for k in _BF16_KEYS:
        stacked[k] = stacked[k].astype(jnp.bfloat16)
    return stacked


# ---------------------------------------------------------------------------
# Forward wrapper
# ---------------------------------------------------------------------------
def transformer_encoder_forward(src, stacked_params, pe_buffer, *, num_head,
                                use_pos_enc=True, use_src_mask=True,
                                num_batch_blocks=1):
    B, S, D = src.shape
    L = stacked_params["wqkv"].shape[0]
    assert B % num_batch_blocks == 0
    bs = B // num_batch_blocks
    N = bs * S

    x2d = src.reshape(B * S, D)
    # PyTorch quirk preserved: pos_encoding[:src.size(0)] indexes by *batch*.
    pe_rows = pe_buffer[:B]                                 # (B, 1, D)

    if use_src_mask:
        row = jax.lax.broadcasted_iota(jnp.int32, (S, S), 0)
        col = jax.lax.broadcasted_iota(jnp.int32, (S, S), 1)
        mask = jnp.where(col > row, -1e30, 0.0).astype(jnp.float32)
    else:
        mask = jnp.zeros((S, S), jnp.float32)

    flat = [stacked_params[k] for k in _STACK_KEYS]         # all (L, a, b)

    def w_spec(p):
        return pl.BlockSpec((1,) + p.shape[1:], lambda b, l: (l, 0, 0))

    kernel = functools.partial(
        _encoder_kernel, num_head=num_head, seq_len=S,
        use_pos_enc=use_pos_enc, pos_scale=float(math.sqrt(D)))

    out2d = pl.pallas_call(
        kernel,
        out_shape=jax.ShapeDtypeStruct((B * S, D), src.dtype),
        grid=(num_batch_blocks, L),
        in_specs=[
            pl.BlockSpec((N, D), lambda b, l: (b, 0)),      # activations
            pl.BlockSpec((bs, 1, D), lambda b, l: (b, 0, 0)),  # pos-enc rows
            pl.BlockSpec((S, S), lambda b, l: (0, 0)),      # additive mask
        ] + [w_spec(p) for p in flat],
        out_specs=pl.BlockSpec((N, D), lambda b, l: (b, 0)),
        scratch_shapes=[pltpu.VMEM((N, D), jnp.float32)],   # resident activation
        compiler_params=pltpu.CompilerParams(
            dimension_semantics=("parallel", "arbitrary")),
    )(x2d, pe_rows, mask, *flat)
    return out2d.reshape(B, S, D)


if __name__ == "__main__":
    # Small, module-consistent shapes.
    B, S = 2, 8                 # batch, sequence
    FEATURE_DIM = 32
    NUM_HEAD = 4
    DIM_FF = 64
    NUM_LAYERS = 2
    MAX_LEN = 64

    key = jax.random.PRNGKey(0)
    k_src, k_par = jax.random.split(key)

    src = jax.random.normal(k_src, (B, S, FEATURE_DIM), jnp.float32)
    layer_params = init_params(k_par, NUM_LAYERS, FEATURE_DIM, DIM_FF)
    stacked = prepare_params(layer_params, FEATURE_DIM, NUM_HEAD)
    pe_buffer = make_pos_encoding(MAX_LEN, FEATURE_DIM)

    out = transformer_encoder_forward(
        src, stacked, pe_buffer,
        num_head=NUM_HEAD, use_pos_enc=True, use_src_mask=True,
        num_batch_blocks=1)     # set 2 on v7x to feed both TensorCores
    jax.block_until_ready(out)
    assert out.shape == (B, S, FEATURE_DIM)
    assert bool(jnp.all(jnp.isfinite(out)))
    print("KERNEL_OK")
</pallas_src>

<mosaic_0001>
module attributes {stable_mosaic.version = 11 : i64} {
  func.func @_encoder_kernel(%arg0: i32, %arg1: i32, %arg2: memref<16x32xf32, #tpu.memory_space<vmem>>, %arg3: memref<2x1x32xf32, #tpu.memory_space<vmem>>, %arg4: memref<8x8xf32, #tpu.memory_space<vmem>>, %arg5: memref<1x96x32xbf16, #tpu.memory_space<vmem>>, %arg6: memref<1x1x96xf32, #tpu.memory_space<vmem>>, %arg7: memref<1x32x32xbf16, #tpu.memory_space<vmem>>, %arg8: memref<1x1x32xf32, #tpu.memory_space<vmem>>, %arg9: memref<1x1x32xf32, #tpu.memory_space<vmem>>, %arg10: memref<1x1x32xf32, #tpu.memory_space<vmem>>, %arg11: memref<1x64x32xbf16, #tpu.memory_space<vmem>>, %arg12: memref<1x1x64xf32, #tpu.memory_space<vmem>>, %arg13: memref<1x32x64xbf16, #tpu.memory_space<vmem>>, %arg14: memref<1x1x32xf32, #tpu.memory_space<vmem>>, %arg15: memref<1x1x32xf32, #tpu.memory_space<vmem>>, %arg16: memref<1x1x32xf32, #tpu.memory_space<vmem>>, %arg17: memref<16x32xf32, #tpu.memory_space<vmem>>, %arg18: memref<16x32xf32, #tpu.memory_space<vmem>>) attributes {dimension_semantics = [#tpu.dimension_semantics<parallel>, #tpu.dimension_semantics<arbitrary>], iteration_bounds = array<i64: 1, 2>, scalar_prefetch = 0 : i64, scratch_operands = 1 : i64, tpu.core_type = #tpu.core_type<tc>, window_params = [{transform_indices = @transform_0, window_bounds = array<i64: 16, 32>}, {transform_indices = @transform_1, window_bounds = array<i64: 2, 1, 32>}, {pipeline_mode = #tpu.pipeline_mode<synchronous>, transform_indices = @transform_2, window_bounds = array<i64: 8, 8>}, {transform_indices = @transform_3, window_bounds = array<i64: 1, 96, 32>}, {transform_indices = @transform_4, window_bounds = array<i64: 1, 1, 96>}, {transform_indices = @transform_5, window_bounds = array<i64: 1, 32, 32>}, {transform_indices = @transform_6, window_bounds = array<i64: 1, 1, 32>}, {transform_indices = @transform_7, window_bounds = array<i64: 1, 1, 32>}, {transform_indices = @transform_8, window_bounds = array<i64: 1, 1, 32>}, {transform_indices = @transform_9, window_bounds = array<i64: 1, 64, 32>}, {transform_indices = @transform_10, window_bounds = array<i64: 1, 1, 64>}, {transform_indices = @transform_11, window_bounds = array<i64: 1, 32, 64>}, {transform_indices = @transform_12, window_bounds = array<i64: 1, 1, 32>}, {transform_indices = @transform_13, window_bounds = array<i64: 1, 1, 32>}, {transform_indices = @transform_14, window_bounds = array<i64: 1, 1, 32>}, {transform_indices = @transform_15, window_bounds = array<i64: 16, 32>}]} {
    %c0_i32 = arith.constant 0 : i32
    %0 = arith.cmpi eq, %arg1, %c0_i32 : i32
    %1 = arith.extui %0 : i1 to i32
    %c0_i32_0 = arith.constant 0 : i32
    %2 = arith.cmpi ne, %1, %c0_i32_0 : i32
    scf.if %2 {
      %c0_73 = arith.constant 0 : index
      %c0_74 = arith.constant 0 : index
      %185 = vector.load %arg2[%c0_73, %c0_74] : memref<16x32xf32, #tpu.memory_space<vmem>>, vector<16x32xf32>
      %c0_75 = arith.constant 0 : index
      %c0_76 = arith.constant 0 : index
      %c0_77 = arith.constant 0 : index
      %186 = vector.load %arg3[%c0_75, %c0_76, %c0_77] : memref<2x1x32xf32, #tpu.memory_space<vmem>>, vector<2x1x32xf32>
      %187 = vector.extract_strided_slice %185 {offsets = [0, 0], sizes = [8, 32], strides = [1, 1]} : vector<16x32xf32> to vector<8x32xf32>
      %cst_78 = arith.constant 5.65685415 : f32
      %188 = vector.broadcast %cst_78 : f32 to vector<8x32xf32>
      %189 = arith.mulf %187, %188 : vector<8x32xf32>
      %190 = vector.extract_strided_slice %186 {offsets = [0, 0, 0], sizes = [1, 1, 32], strides = [1, 1, 1]} : vector<2x1x32xf32> to vector<1x1x32xf32>
      %191 = vector.shape_cast %190 : vector<1x1x32xf32> to vector<1x32xf32>
      %192 = vector.broadcast %191 : vector<1x32xf32> to vector<8x32xf32>
      %193 = arith.addf %189, %192 : vector<8x32xf32>
      %c0_79 = arith.constant 0 : index
      %c0_80 = arith.constant 0 : index
      %194 = vector.load %arg18[%c0_79, %c0_80] : memref<16x32xf32, #tpu.memory_space<vmem>>, vector<8x32xf32>
      tpu.vector_store %arg18[%c0_79, %c0_80], %193 {strides = array<i32>} : memref<16x32xf32, #tpu.memory_space<vmem>>, vector<8x32xf32>,
      %195 = vector.extract_strided_slice %185 {offsets = [8, 0], sizes = [8, 32], strides = [1, 1]} : vector<16x32xf32> to vector<8x32xf32>
      %cst_81 = arith.constant 5.65685415 : f32
      %196 = vector.broadcast %cst_81 : f32 to vector<8x32xf32>
      %197 = arith.mulf %195, %196 : vector<8x32xf32>
      %198 = vector.extract_strided_slice %186 {offsets = [1, 0, 0], sizes = [1, 1, 32], strides = [1, 1, 1]} : vector<2x1x32xf32> to vector<1x1x32xf32>
      %199 = vector.shape_cast %198 : vector<1x1x32xf32> to vector<1x32xf32>
      %200 = vector.broadcast %199 : vector<1x32xf32> to vector<8x32xf32>
      %201 = arith.addf %197, %200 : vector<8x32xf32>
      %c8 = arith.constant 8 : index
      %c0_82 = arith.constant 0 : index
      %202 = vector.load %arg18[%c8, %c0_82] : memref<16x32xf32, #tpu.memory_space<vmem>>, vector<8x32xf32>
      tpu.vector_store %arg18[%c8, %c0_82], %201 {strides = array<i32>} : memref<16x32xf32, #tpu.memory_space<vmem>>, vector<8x32xf32>,
    } else {
    }
    %c0 = arith.constant 0 : index
    %c0_1 = arith.constant 0 : index
    %3 = vector.load %arg18[%c0, %c0_1] : memref<16x32xf32, #tpu.memory_space<vmem>>, vector<16x32xf32>
    %4 = arith.truncf %3 : vector<16x32xf32> to vector<16x32xbf16>
    %c0_2 = arith.constant 0 : index
    %c0_3 = arith.constant 0 : index
    %c0_4 = arith.constant 0 : index
    %5 = vector.load %arg5[%c0_2, %c0_3, %c0_4] : memref<1x96x32xbf16, #tpu.memory_space<vmem>>, vector<1x96x32xbf16>
    %6 = vector.shape_cast %5 : vector<1x96x32xbf16> to vector<96x32xbf16>
    %cst = arith.constant dense<0.000000e+00> : vector<16x96xf32>
    %7 = tpu.matmul %4, %6, %cst {dimension_numbers = #tpu.dot_dimension_numbers<[1], [1], [0], [0], [0, 0, 1, 0], [], []>} : vector<16x32xbf16>, vector<96x32xbf16>, vector<16x96xf32> -> vector<16x96xf32>
    %c0_5 = arith.constant 0 : index
    %c0_6 = arith.constant 0 : index
    %c0_7 = arith.constant 0 : index
    %8 = vector.load %arg6[%c0_5, %c0_6, %c0_7] : memref<1x1x96xf32, #tpu.memory_space<vmem>>, vector<1x1x96xf32>
    %9 = vector.shape_cast %8 : vector<1x1x96xf32> to vector<1x96xf32>
    %10 = vector.broadcast %9 : vector<1x96xf32> to vector<16x96xf32>
    %11 = arith.addf %7, %10 : vector<16x96xf32>
    %12 = vector.extract_strided_slice %11 {offsets = [0, 0], sizes = [16, 32], strides = [1, 1]} : vector<16x96xf32> to vector<16x32xf32>
    %13 = vector.shape_cast %12 : vector<16x32xf32> to vector<2x8x32xf32>
    %14 = vector.extract_strided_slice %11 {offsets = [0, 32], sizes = [16, 32], strides = [1, 1]} : vector<16x96xf32> to vector<16x32xf32>
    %15 = vector.shape_cast %14 : vector<16x32xf32> to vector<2x8x32xf32>
    %16 = vector.extract_strided_slice %11 {offsets = [0, 64], sizes = [16, 32], strides = [1, 1]} : vector<16x96xf32> to vector<16x32xf32>
    %17 = vector.shape_cast %16 : vector<16x32xf32> to vector<2x8x32xf32>
    %c0_8 = arith.constant 0 : index
    %c0_9 = arith.constant 0 : index
    %18 = vector.load %arg4[%c0_8, %c0_9] : memref<8x8xf32, #tpu.memory_space<vmem>>, vector<8x8xf32>
    %19 = vector.extract_strided_slice %13 {offsets = [0, 0, 0], sizes = [2, 8, 8], strides = [1, 1, 1]} : vector<2x8x32xf32> to vector<2x8x8xf32>
    %20 = arith.truncf %19 : vector<2x8x8xf32> to vector<2x8x8xbf16>
    %21 = vector.extract_strided_slice %15 {offsets = [0, 0, 0], sizes = [2, 8, 8], strides = [1, 1, 1]} : vector<2x8x32xf32> to vector<2x8x8xf32>
    %22 = arith.truncf %21 : vector<2x8x8xf32> to vector<2x8x8xbf16>
    %23 = vector.extract_strided_slice %17 {offsets = [0, 0, 0], sizes = [2, 8, 8], strides = [1, 1, 1]} : vector<2x8x32xf32> to vector<2x8x8xf32>
    %24 = arith.truncf %23 : vector<2x8x8xf32> to vector<2x8x8xbf16>
    "tpu.trace_start"() <{level = 10 : i32, message = "bqd,bkd->bqk"}> : () -> ()
    %cst_10 = arith.constant dense<0.000000e+00> : vector<2x8x8xf32>
    %25 = tpu.matmul %20, %22, %cst_10 {dimension_numbers = #tpu.dot_dimension_numbers<[2], [2], [1], [1], [0, 0, 0, 1, 1, 1], [0], [0]>} : vector<2x8x8xbf16>, vector<2x8x8xbf16>, vector<2x8x8xf32> -> vector<2x8x8xf32>
    "tpu.trace_stop"() : () -> ()
    %26 = vector.shape_cast %18 : vector<8x8xf32> to vector<1x8x8xf32>
    %27 = vector.broadcast %26 : vector<1x8x8xf32> to vector<2x8x8xf32>
    %28 = arith.addf %25, %27 : vector<2x8x8xf32>
    %cst_11 = arith.constant dense<0xFF800000> : vector<2x8xf32>
    %29 = vector.multi_reduction <maximumf>, %28, %cst_11 [2] : vector<2x8x8xf32> to vector<2x8xf32>
    %30 = vector.shape_cast %29 : vector<2x8xf32> to vector<2x8x1xf32>
    %31 = vector.broadcast %30 : vector<2x8x1xf32> to vector<2x8x8xf32>
    %32 = arith.subf %28, %31 : vector<2x8x8xf32>
    %33 = math.exp %32 : vector<2x8x8xf32>
    %cst_12 = arith.constant dense<0.000000e+00> : vector<2x8xf32>
    %34 = vector.multi_reduction <add>, %33, %cst_12 [2] : vector<2x8x8xf32> to vector<2x8xf32>
    %35 = vector.shape_cast %34 : vector<2x8xf32> to vector<2x8x1xf32>
    %36 = vector.broadcast %35 : vector<2x8x1xf32> to vector<2x8x8xf32>
    %37 = arith.divf %33, %36 : vector<2x8x8xf32>
    %38 = arith.truncf %37 : vector<2x8x8xf32> to vector<2x8x8xbf16>
    "tpu.trace_start"() <{level = 10 : i32, message = "bqk,bkd->bqd"}> : () -> ()
    %cst_13 = arith.constant dense<0.000000e+00> : vector<2x8x8xf32>
    %39 = tpu.matmul %38, %24, %cst_13 {dimension_numbers = #tpu.dot_dimension_numbers<[2], [1], [1], [2], [0, 0, 0, 1, 1, 2], [0], [0]>} : vector<2x8x8xbf16>, vector<2x8x8xbf16>, vector<2x8x8xf32> -> vector<2x8x8xf32>
    "tpu.trace_stop"() : () -> ()
    %40 = vector.extract_strided_slice %13 {offsets = [0, 0, 8], sizes = [2, 8, 8], strides = [1, 1, 1]} : vector<2x8x32xf32> to vector<2x8x8xf32>
    %41 = arith.truncf %40 : vector<2x8x8xf32> to vector<2x8x8xbf16>
    %42 = vector.extract_strided_slice %15 {offsets = [0, 0, 8], sizes = [2, 8, 8], strides = [1, 1, 1]} : vector<2x8x32xf32> to vector<2x8x8xf32>
    %43 = arith.truncf %42 : vector<2x8x8xf32> to vector<2x8x8xbf16>
    %44 = vector.extract_strided_slice %17 {offsets = [0, 0, 8], sizes = [2, 8, 8], strides = [1, 1, 1]} : vector<2x8x32xf32> to vector<2x8x8xf32>
    %45 = arith.truncf %44 : vector<2x8x8xf32> to vector<2x8x8xbf16>
    "tpu.trace_start"() <{level = 10 : i32, message = "bqd,bkd->bqk"}> : () -> ()
    %cst_14 = arith.constant dense<0.000000e+00> : vector<2x8x8xf32>
    %46 = tpu.matmul %41, %43, %cst_14 {dimension_numbers = #tpu.dot_dimension_numbers<[2], [2], [1], [1], [0, 0, 0, 1, 1, 1], [0], [0]>} : vector<2x8x8xbf16>, vector<2x8x8xbf16>, vector<2x8x8xf32> -> vector<2x8x8xf32>
    "tpu.trace_stop"() : () -> ()
    %47 = vector.shape_cast %18 : vector<8x8xf32> to vector<1x8x8xf32>
    %48 = vector.broadcast %47 : vector<1x8x8xf32> to vector<2x8x8xf32>
    %49 = arith.addf %46, %48 : vector<2x8x8xf32>
    %cst_15 = arith.constant dense<0xFF800000> : vector<2x8xf32>
    %50 = vector.multi_reduction <maximumf>, %49, %cst_15 [2] : vector<2x8x8xf32> to vector<2x8xf32>
    %51 = vector.shape_cast %50 : vector<2x8xf32> to vector<2x8x1xf32>
    %52 = vector.broadcast %51 : vector<2x8x1xf32> to vector<2x8x8xf32>
    %53 = arith.subf %49, %52 : vector<2x8x8xf32>
    %54 = math.exp %53 : vector<2x8x8xf32>
    %cst_16 = arith.constant dense<0.000000e+00> : vector<2x8xf32>
    %55 = vector.multi_reduction <add>, %54, %cst_16 [2] : vector<2x8x8xf32> to vector<2x8xf32>
    %56 = vector.shape_cast %55 : vector<2x8xf32> to vector<2x8x1xf32>
    %57 = vector.broadcast %56 : vector<2x8x1xf32> to vector<2x8x8xf32>
    %58 = arith.divf %54, %57 : vector<2x8x8xf32>
    %59 = arith.truncf %58 : vector<2x8x8xf32> to vector<2x8x8xbf16>
    "tpu.trace_start"() <{level = 10 : i32, message = "bqk,bkd->bqd"}> : () -> ()
    %cst_17 = arith.constant dense<0.000000e+00> : vector<2x8x8xf32>
    %60 = tpu.matmul %59, %45, %cst_17 {dimension_numbers = #tpu.dot_dimension_numbers<[2], [1], [1], [2], [0, 0, 0, 1, 1, 2], [0], [0]>} : vector<2x8x8xbf16>, vector<2x8x8xbf16>, vector<2x8x8xf32> -> vector<2x8x8xf32>
    "tpu.trace_stop"() : () -> ()
    %61 = vector.extract_strided_slice %13 {offsets = [0, 0, 16], sizes = [2, 8, 8], strides = [1, 1, 1]} : vector<2x8x32xf32> to vector<2x8x8xf32>
    %62 = arith.truncf %61 : vector<2x8x8xf32> to vector<2x8x8xbf16>
    %63 = vector.extract_strided_slice %15 {offsets = [0, 0, 16], sizes = [2, 8, 8], strides = [1, 1, 1]} : vector<2x8x32xf32> to vector<2x8x8xf32>
    %64 = arith.truncf %63 : vector<2x8x8xf32> to vector<2x8x8xbf16>
    %65 = vector.extract_strided_slice %17 {offsets = [0, 0, 16], sizes = [2, 8, 8], strides = [1, 1, 1]} : vector<2x8x32xf32> to vector<2x8x8xf32>
    %66 = arith.truncf %65 : vector<2x8x8xf32> to vector<2x8x8xbf16>
    "tpu.trace_start"() <{level = 10 : i32, message = "bqd,bkd->bqk"}> : () -> ()
    %cst_18 = arith.constant dense<0.000000e+00> : vector<2x8x8xf32>
    %67 = tpu.matmul %62, %64, %cst_18 {dimension_numbers = #tpu.dot_dimension_numbers<[2], [2], [1], [1], [0, 0, 0, 1, 1, 1], [0], [0]>} : vector<2x8x8xbf16>, vector<2x8x8xbf16>, vector<2x8x8xf32> -> vector<2x8x8xf32>
    "tpu.trace_stop"() : () -> ()
    %68 = vector.shape_cast %18 : vector<8x8xf32> to vector<1x8x8xf32>
    %69 = vector.broadcast %68 : vector<1x8x8xf32> to vector<2x8x8xf32>
    %70 = arith.addf %67, %69 : vector<2x8x8xf32>
    %cst_19 = arith.constant dense<0xFF800000> : vector<2x8xf32>
    %71 = vector.multi_reduction <maximumf>, %70, %cst_19 [2] : vector<2x8x8xf32> to vector<2x8xf32>
    %72 = vector.shape_cast %71 : vector<2x8xf32> to vector<2x8x1xf32>
    %73 = vector.broadcast %72 : vector<2x8x1xf32> to vector<2x8x8xf32>
    %74 = arith.subf %70, %73 : vector<2x8x8xf32>
    %75 = math.exp %74 : vector<2x8x8xf32>
    %cst_20 = arith.constant dense<0.000000e+00> : vector<2x8xf32>
    %76 = vector.multi_reduction <add>, %75, %cst_20 [2] : vector<2x8x8xf32> to vector<2x8xf32>
    %77 = vector.shape_cast %76 : vector<2x8xf32> to vector<2x8x1xf32>
    %78 = vector.broadcast %77 : vector<2x8x1xf32> to vector<2x8x8xf32>
    %79 = arith.divf %75, %78 : vector<2x8x8xf32>
    %80 = arith.truncf %79 : vector<2x8x8xf32> to vector<2x8x8xbf16>
    "tpu.trace_start"() <{level = 10 : i32, message = "bqk,bkd->bqd"}> : () -> ()
    %cst_21 = arith.constant dense<0.000000e+00> : vector<2x8x8xf32>
    %81 = tpu.matmul %80, %66, %cst_21 {dimension_numbers = #tpu.dot_dimension_numbers<[2], [1], [1], [2], [0, 0, 0, 1, 1, 2], [0], [0]>} : vector<2x8x8xbf16>, vector<2x8x8xbf16>, vector<2x8x8xf32> -> vector<2x8x8xf32>
    "tpu.trace_stop"() : () -> ()
    %82 = vector.extract_strided_slice %13 {offsets = [0, 0, 24], sizes = [2, 8, 8], strides = [1, 1, 1]} : vector<2x8x32xf32> to vector<2x8x8xf32>
    %83 = arith.truncf %82 : vector<2x8x8xf32> to vector<2x8x8xbf16>
    %84 = vector.extract_strided_slice %15 {offsets = [0, 0, 24], sizes = [2, 8, 8], strides = [1, 1, 1]} : vector<2x8x32xf32> to vector<2x8x8xf32>
    %85 = arith.truncf %84 : vector<2x8x8xf32> to vector<2x8x8xbf16>
    %86 = vector.extract_strided_slice %17 {offsets = [0, 0, 24], sizes = [2, 8, 8], strides = [1, 1, 1]} : vector<2x8x32xf32> to vector<2x8x8xf32>
    %87 = arith.truncf %86 : vector<2x8x8xf32> to vector<2x8x8xbf16>
    "tpu.trace_start"() <{level = 10 : i32, message = "bqd,bkd->bqk"}> : () -> ()
    %cst_22 = arith.constant dense<0.000000e+00> : vector<2x8x8xf32>
    %88 = tpu.matmul %83, %85, %cst_22 {dimension_numbers = #tpu.dot_dimension_numbers<[2], [2], [1], [1], [0, 0, 0, 1, 1, 1], [0], [0]>} : vector<2x8x8xbf16>, vector<2x8x8xbf16>, vector<2x8x8xf32> -> vector<2x8x8xf32>
    "tpu.trace_stop"() : () -> ()
    %89 = vector.shape_cast %18 : vector<8x8xf32> to vector<1x8x8xf32>
    %90 = vector.broadcast %89 : vector<1x8x8xf32> to vector<2x8x8xf32>
    %91 = arith.addf %88, %90 : vector<2x8x8xf32>
    %cst_23 = arith.constant dense<0xFF800000> : vector<2x8xf32>
    %92 = vector.multi_reduction <maximumf>, %91, %cst_23 [2] : vector<2x8x8xf32> to vector<2x8xf32>
    %93 = vector.shape_cast %92 : vector<2x8xf32> to vector<2x8x1xf32>
    %94 = vector.broadcast %93 : vector<2x8x1xf32> to vector<2x8x8xf32>
    %95 = arith.subf %91, %94 : vector<2x8x8xf32>
    %96 = math.exp %95 : vector<2x8x8xf32>
    %cst_24 = arith.constant dense<0.000000e+00> : vector<2x8xf32>
    %97 = vector.multi_reduction <add>, %96, %cst_24 [2] : vector<2x8x8xf32> to vector<2x8xf32>
    %98 = vector.shape_cast %97 : vector<2x8xf32> to vector<2x8x1xf32>
    %99 = vector.broadcast %98 : vector<2x8x1xf32> to vector<2x8x8xf32>
    %100 = arith.divf %96, %99 : vector<2x8x8xf32>
    %101 = arith.truncf %100 : vector<2x8x8xf32> to vector<2x8x8xbf16>
    "tpu.trace_start"() <{level = 10 : i32, message = "bqk,bkd->bqd"}> : () -> ()
    %cst_25 = arith.constant dense<0.000000e+00> : vector<2x8x8xf32>
    %102 = tpu.matmul %101, %87, %cst_25 {dimension_numbers = #tpu.dot_dimension_numbers<[2], [1], [1], [2], [0, 0, 0, 1, 1, 2], [0], [0]>} : vector<2x8x8xbf16>, vector<2x8x8xbf16>, vector<2x8x8xf32> -> vector<2x8x8xf32>
    "tpu.trace_stop"() : () -> ()
    %103 = tpu.concatenate %39, %60, %81, %102 in 2 : vector<2x8x8xf32>, vector<2x8x8xf32>, vector<2x8x8xf32>, vector<2x8x8xf32> -> vector<2x8x32xf32>
    %104 = vector.shape_cast %103 : vector<2x8x32xf32> to vector<16x32xf32>
    %105 = arith.truncf %104 : vector<16x32xf32> to vector<16x32xbf16>
    %c0_26 = arith.constant 0 : index
    %c0_27 = arith.constant 0 : index
    %c0_28 = arith.constant 0 : index
    %106 = vector.load %arg7[%c0_26, %c0_27, %c0_28] : memref<1x32x32xbf16, #tpu.memory_space<vmem>>, vector<1x32x32xbf16>
    %107 = vector.shape_cast %106 : vector<1x32x32xbf16> to vector<32x32xbf16>
    %cst_29 = arith.constant dense<0.000000e+00> : vector<16x32xf32>
    %108 = tpu.matmul %105, %107, %cst_29 {dimension_numbers = #tpu.dot_dimension_numbers<[1], [1], [0], [0], [0, 0, 1, 0], [], []>} : vector<16x32xbf16>, vector<32x32xbf16>, vector<16x32xf32> -> vector<16x32xf32>
    %c0_30 = arith.constant 0 : index
    %c0_31 = arith.constant 0 : index
    %c0_32 = arith.constant 0 : index
    %109 = vector.load %arg8[%c0_30, %c0_31, %c0_32] : memref<1x1x32xf32, #tpu.memory_space<vmem>>, vector<1x1x32xf32>
    %110 = vector.shape_cast %109 : vector<1x1x32xf32> to vector<1x32xf32>
    %111 = vector.broadcast %110 : vector<1x32xf32> to vector<16x32xf32>
    %112 = arith.addf %108, %111 : vector<16x32xf32>
    %113 = arith.addf %3, %112 : vector<16x32xf32>
    %c0_33 = arith.constant 0 : index
    %c0_34 = arith.constant 0 : index
    %c0_35 = arith.constant 0 : index
    %114 = vector.load %arg9[%c0_33, %c0_34, %c0_35] : memref<1x1x32xf32, #tpu.memory_space<vmem>>, vector<1x1x32xf32>
    %115 = vector.shape_cast %114 : vector<1x1x32xf32> to vector<1x32xf32>
    %c0_36 = arith.constant 0 : index
    %c0_37 = arith.constant 0 : index
    %c0_38 = arith.constant 0 : index
    %116 = vector.load %arg10[%c0_36, %c0_37, %c0_38] : memref<1x1x32xf32, #tpu.memory_space<vmem>>, vector<1x1x32xf32>
    %117 = vector.shape_cast %116 : vector<1x1x32xf32> to vector<1x32xf32>
    %cst_39 = arith.constant dense<0.000000e+00> : vector<16xf32>
    %118 = vector.multi_reduction <add>, %113, %cst_39 [1] : vector<16x32xf32> to vector<16xf32>
    %119 = vector.shape_cast %118 : vector<16xf32> to vector<16x1xf32>
    %cst_40 = arith.constant 3.200000e+01 : f32
    %120 = vector.broadcast %cst_40 : f32 to vector<16x1xf32>
    %121 = arith.divf %119, %120 : vector<16x1xf32>
    %122 = vector.broadcast %121 : vector<16x1xf32> to vector<16x32xf32>
    %123 = arith.subf %113, %122 : vector<16x32xf32>
    %124 = arith.mulf %123, %123 : vector<16x32xf32>
    %cst_41 = arith.constant dense<0.000000e+00> : vector<16xf32>
    %125 = vector.multi_reduction <add>, %124, %cst_41 [1] : vector<16x32xf32> to vector<16xf32>
    %126 = vector.shape_cast %125 : vector<16xf32> to vector<16x1xf32>
    %cst_42 = arith.constant 3.200000e+01 : f32
    %127 = vector.broadcast %cst_42 : f32 to vector<16x1xf32>
    %128 = arith.divf %126, %127 : vector<16x1xf32>
    %cst_43 = arith.constant 9.99999974E-6 : f32
    %129 = vector.broadcast %cst_43 : f32 to vector<16x1xf32>
    %130 = arith.addf %128, %129 : vector<16x1xf32>
    %131 = math.rsqrt %130 : vector<16x1xf32>
    %132 = vector.broadcast %131 : vector<16x1xf32> to vector<16x32xf32>
    %133 = arith.mulf %123, %132 : vector<16x32xf32>
    %134 = vector.broadcast %115 : vector<1x32xf32> to vector<16x32xf32>
    %135 = arith.mulf %133, %134 : vector<16x32xf32>
    %136 = vector.broadcast %117 : vector<1x32xf32> to vector<16x32xf32>
    %137 = arith.addf %135, %136 : vector<16x32xf32>
    %138 = arith.truncf %137 : vector<16x32xf32> to vector<16x32xbf16>
    %c0_44 = arith.constant 0 : index
    %c0_45 = arith.constant 0 : index
    %c0_46 = arith.constant 0 : index
    %139 = vector.load %arg11[%c0_44, %c0_45, %c0_46] : memref<1x64x32xbf16, #tpu.memory_space<vmem>>, vector<1x64x32xbf16>
    %140 = vector.shape_cast %139 : vector<1x64x32xbf16> to vector<64x32xbf16>
    %cst_47 = arith.constant dense<0.000000e+00> : vector<16x64xf32>
    %141 = tpu.matmul %138, %140, %cst_47 {dimension_numbers = #tpu.dot_dimension_numbers<[1], [1], [0], [0], [0, 0, 1, 0], [], []>} : vector<16x32xbf16>, vector<64x32xbf16>, vector<16x64xf32> -> vector<16x64xf32>
    %c0_48 = arith.constant 0 : index
    %c0_49 = arith.constant 0 : index
    %c0_50 = arith.constant 0 : index
    %142 = vector.load %arg12[%c0_48, %c0_49, %c0_50] : memref<1x1x64xf32, #tpu.memory_space<vmem>>, vector<1x1x64xf32>
    %143 = vector.shape_cast %142 : vector<1x1x64xf32> to vector<1x64xf32>
    %144 = vector.broadcast %143 : vector<1x64xf32> to vector<16x64xf32>
    %145 = arith.addf %141, %144 : vector<16x64xf32>
    %cst_51 = arith.constant 0.000000e+00 : f32
    %146 = vector.broadcast %cst_51 : f32 to vector<16x64xf32>
    %147 = arith.maximumf %145, %146 : vector<16x64xf32>
    %148 = arith.truncf %147 : vector<16x64xf32> to vector<16x64xbf16>
    %c0_52 = arith.constant 0 : index
    %c0_53 = arith.constant 0 : index
    %c0_54 = arith.constant 0 : index
    %149 = vector.load %arg13[%c0_52, %c0_53, %c0_54] : memref<1x32x64xbf16, #tpu.memory_space<vmem>>, vector<1x32x64xbf16>
    %150 = vector.shape_cast %149 : vector<1x32x64xbf16> to vector<32x64xbf16>
    %cst_55 = arith.constant dense<0.000000e+00> : vector<16x32xf32>
    %151 = tpu.matmul %148, %150, %cst_55 {dimension_numbers = #tpu.dot_dimension_numbers<[1], [1], [0], [0], [0, 0, 1, 0], [], []>} : vector<16x64xbf16>, vector<32x64xbf16>, vector<16x32xf32> -> vector<16x32xf32>
    %c0_56 = arith.constant 0 : index
    %c0_57 = arith.constant 0 : index
    %c0_58 = arith.constant 0 : index
    %152 = vector.load %arg14[%c0_56, %c0_57, %c0_58] : memref<1x1x32xf32, #tpu.memory_space<vmem>>, vector<1x1x32xf32>
    %153 = vector.shape_cast %152 : vector<1x1x32xf32> to vector<1x32xf32>
    %154 = vector.broadcast %153 : vector<1x32xf32> to vector<16x32xf32>
    %155 = arith.addf %151, %154 : vector<16x32xf32>
    %156 = arith.addf %137, %155 : vector<16x32xf32>
    %c0_59 = arith.constant 0 : index
    %c0_60 = arith.constant 0 : index
    %c0_61 = arith.constant 0 : index
    %157 = vector.load %arg15[%c0_59, %c0_60, %c0_61] : memref<1x1x32xf32, #tpu.memory_space<vmem>>, vector<1x1x32xf32>
    %158 = vector.shape_cast %157 : vector<1x1x32xf32> to vector<1x32xf32>
    %c0_62 = arith.constant 0 : index
    %c0_63 = arith.constant 0 : index
    %c0_64 = arith.constant 0 : index
    %159 = vector.load %arg16[%c0_62, %c0_63, %c0_64] : memref<1x1x32xf32, #tpu.memory_space<vmem>>, vector<1x1x32xf32>
    %160 = vector.shape_cast %159 : vector<1x1x32xf32> to vector<1x32xf32>
    %cst_65 = arith.constant dense<0.000000e+00> : vector<16xf32>
    %161 = vector.multi_reduction <add>, %156, %cst_65 [1] : vector<16x32xf32> to vector<16xf32>
    %162 = vector.shape_cast %161 : vector<16xf32> to vector<16x1xf32>
    %cst_66 = arith.constant 3.200000e+01 : f32
    %163 = vector.broadcast %cst_66 : f32 to vector<16x1xf32>
    %164 = arith.divf %162, %163 : vector<16x1xf32>
    %165 = vector.broadcast %164 : vector<16x1xf32> to vector<16x32xf32>
    %166 = arith.subf %156, %165 : vector<16x32xf32>
    %167 = arith.mulf %166, %166 : vector<16x32xf32>
    %cst_67 = arith.constant dense<0.000000e+00> : vector<16xf32>
    %168 = vector.multi_reduction <add>, %167, %cst_67 [1] : vector<16x32xf32> to vector<16xf32>
    %169 = vector.shape_cast %168 : vector<16xf32> to vector<16x1xf32>
    %cst_68 = arith.constant 3.200000e+01 : f32
    %170 = vector.broadcast %cst_68 : f32 to vector<16x1xf32>
    %171 = arith.divf %169, %170 : vector<16x1xf32>
    %cst_69 = arith.constant 9.99999974E-6 : f32
    %172 = vector.broadcast %cst_69 : f32 to vector<16x1xf32>
    %173 = arith.addf %171, %172 : vector<16x1xf32>
    %174 = math.rsqrt %173 : vector<16x1xf32>
    %175 = vector.broadcast %174 : vector<16x1xf32> to vector<16x32xf32>
    %176 = arith.mulf %166, %175 : vector<16x32xf32>
    %177 = vector.broadcast %158 : vector<1x32xf32> to vector<16x32xf32>
    %178 = arith.mulf %176, %177 : vector<16x32xf32>
    %179 = vector.broadcast %160 : vector<1x32xf32> to vector<16x32xf32>
    %180 = arith.addf %178, %179 : vector<16x32xf32>
    %c0_70 = arith.constant 0 : index
    %c0_71 = arith.constant 0 : index
    %181 = vector.load %arg18[%c0_70, %c0_71] : memref<16x32xf32, #tpu.memory_space<vmem>>, vector<16x32xf32>
    tpu.vector_store %arg18[%c0_70, %c0_71], %180 {strides = array<i32>} : memref<16x32xf32, #tpu.memory_space<vmem>>, vector<16x32xf32>,
    %c1_i32 = arith.constant 1 : i32
    %182 = arith.cmpi eq, %arg1, %c1_i32 : i32
    %183 = arith.extui %182 : i1 to i32
    %c0_i32_72 = arith.constant 0 : i32
    %184 = arith.cmpi ne, %183, %c0_i32_72 : i32
    scf.if %184 {
      %c0_73 = arith.constant 0 : index
      %c0_74 = arith.constant 0 : index
      %185 = vector.load %arg17[%c0_73, %c0_74] : memref<16x32xf32, #tpu.memory_space<vmem>>, vector<16x32xf32>
      tpu.vector_store %arg17[%c0_73, %c0_74], %180 {strides = array<i32>} : memref<16x32xf32, #tpu.memory_space<vmem>>, vector<16x32xf32>,
    } else {
    }
    return
  }
  func.func @transform_0(%arg0: i32, %arg1: i32) -> (i32, i32) {
    %c0_i32 = arith.constant 0 : i32
    %c0_i32_0 = arith.constant 0 : i32
    return %arg0, %c0_i32 : i32, i32
  }
  func.func @transform_1(%arg0: i32, %arg1: i32) -> (i32, i32, i32) {
    %c0_i32 = arith.constant 0 : i32
    %c0_i32_0 = arith.constant 0 : i32
    %c0_i32_1 = arith.constant 0 : i32
    return %arg0, %c0_i32, %c0_i32_0 : i32, i32, i32
  }
  func.func @transform_2(%arg0: i32, %arg1: i32) -> (i32, i32) {
    %c0_i32 = arith.constant 0 : i32
    %c0_i32_0 = arith.constant 0 : i32
    %c0_i32_1 = arith.constant 0 : i32
    return %c0_i32, %c0_i32_0 : i32, i32
  }
  func.func @transform_3(%arg0: i32, %arg1: i32) -> (i32, i32, i32) {
    %c0_i32 = arith.constant 0 : i32
    %c0_i32_0 = arith.constant 0 : i32
    %c0_i32_1 = arith.constant 0 : i32
    return %arg1, %c0_i32, %c0_i32_0 : i32, i32, i32
  }
  func.func @transform_4(%arg0: i32, %arg1: i32) -> (i32, i32, i32) {
    %c0_i32 = arith.constant 0 : i32
    %c0_i32_0 = arith.constant 0 : i32
    %c0_i32_1 = arith.constant 0 : i32
    return %arg1, %c0_i32, %c0_i32_0 : i32, i32, i32
  }
  func.func @transform_5(%arg0: i32, %arg1: i32) -> (i32, i32, i32) {
    %c0_i32 = arith.constant 0 : i32
    %c0_i32_0 = arith.constant 0 : i32
    %c0_i32_1 = arith.constant 0 : i32
    return %arg1, %c0_i32, %c0_i32_0 : i32, i32, i32
  }
  func.func @transform_6(%arg0: i32, %arg1: i32) -> (i32, i32, i32) {
    %c0_i32 = arith.constant 0 : i32
    %c0_i32_0 = arith.constant 0 : i32
    %c0_i32_1 = arith.constant 0 : i32
    return %arg1, %c0_i32, %c0_i32_0 : i32, i32, i32
  }
  func.func @transform_7(%arg0: i32, %arg1: i32) -> (i32, i32, i32) {
    %c0_i32 = arith.constant 0 : i32
    %c0_i32_0 = arith.constant 0 : i32
    %c0_i32_1 = arith.constant 0 : i32
    return %arg1, %c0_i32, %c0_i32_0 : i32, i32, i32
  }
  func.func @transform_8(%arg0: i32, %arg1: i32) -> (i32, i32, i32) {
    %c0_i32 = arith.constant 0 : i32
    %c0_i32_0 = arith.constant 0 : i32
    %c0_i32_1 = arith.constant 0 : i32
    return %arg1, %c0_i32, %c0_i32_0 : i32, i32, i32
  }
  func.func @transform_9(%arg0: i32, %arg1: i32) -> (i32, i32, i32) {
    %c0_i32 = arith.constant 0 : i32
    %c0_i32_0 = arith.constant 0 : i32
    %c0_i32_1 = arith.constant 0 : i32
    return %arg1, %c0_i32, %c0_i32_0 : i32, i32, i32
  }
  func.func @transform_10(%arg0: i32, %arg1: i32) -> (i32, i32, i32) {
    %c0_i32 = arith.constant 0 : i32
    %c0_i32_0 = arith.constant 0 : i32
    %c0_i32_1 = arith.constant 0 : i32
    return %arg1, %c0_i32, %c0_i32_0 : i32, i32, i32
  }
  func.func @transform_11(%arg0: i32, %arg1: i32) -> (i32, i32, i32) {
    %c0_i32 = arith.constant 0 : i32
    %c0_i32_0 = arith.constant 0 : i32
    %c0_i32_1 = arith.constant 0 : i32
    return %arg1, %c0_i32, %c0_i32_0 : i32, i32, i32
  }
  func.func @transform_12(%arg0: i32, %arg1: i32) -> (i32, i32, i32) {
    %c0_i32 = arith.constant 0 : i32
    %c0_i32_0 = arith.constant 0 : i32
    %c0_i32_1 = arith.constant 0 : i32
    return %arg1, %c0_i32, %c0_i32_0 : i32, i32, i32
  }
  func.func @transform_13(%arg0: i32, %arg1: i32) -> (i32, i32, i32) {
    %c0_i32 = arith.constant 0 : i32
    %c0_i32_0 = arith.constant 0 : i32
    %c0_i32_1 = arith.constant 0 : i32
    return %arg1, %c0_i32, %c0_i32_0 : i32, i32, i32
  }
  func.func @transform_14(%arg0: i32, %arg1: i32) -> (i32, i32, i32) {
    %c0_i32 = arith.constant 0 : i32
    %c0_i32_0 = arith.constant 0 : i32
    %c0_i32_1 = arith.constant 0 : i32
    return %arg1, %c0_i32, %c0_i32_0 : i32, i32, i32
  }
  func.func @transform_15(%arg0: i32, %arg1: i32) -> (i32, i32) {
    %c0_i32 = arith.constant 0 : i32
    %c0_i32_0 = arith.constant 0 : i32
    return %arg0, %c0_i32 : i32, i32
  }
}

</mosaic_0001>

<llo_original>
// kernel: tpu_custom_call.1
$region0: #{tpu_custom_call.1}
  #allocation0 [shape = 'u32[]', space=smem, size = 0x4, offset = 0x4, fixed_abs, tag = 'smem constant byte address 0x4 - core index']
  #allocation1 [shape = 'u32[144,128]{1,0:T(1,128)}', space=vmem, size = 0x12000, scoped, tag = 'internal scratch']
  #allocation2 [shape = 'f32[16,32]{1,0:T(8,128)}', space=vmem, size = 0x2000, scoped, tag = 'scratch operand']
  %s0 = inlined_call_operand.vmem [shape: f32[16,32], index: 0, kind: input, shape index: {}]
  %s1 = inlined_call_operand.vmem [shape: f32[2,1,32], index: 1, kind: input, shape index: {}]
  %s2 = inlined_call_operand.vmem [shape: f32[8,8], index: 2, kind: input, shape index: {}]
  %s3 = inlined_call_operand.vmem [shape: bf16[2,96,32], index: 3, kind: input, shape index: {}]
  %s4 = inlined_call_operand.vmem [shape: f32[2,1,96], index: 4, kind: input, shape index: {}]
  %s5 = inlined_call_operand.vmem [shape: bf16[2,32,32], index: 5, kind: input, shape index: {}]
  %s6 = inlined_call_operand.vmem [shape: f32[2,1,32], index: 6, kind: input, shape index: {}]
  %s7 = inlined_call_operand.vmem [shape: f32[2,1,32], index: 7, kind: input, shape index: {}]
  %s8 = inlined_call_operand.vmem [shape: f32[2,1,32], index: 8, kind: input, shape index: {}]
  %s9 = inlined_call_operand.vmem [shape: bf16[2,64,32], index: 9, kind: input, shape index: {}]
  %s10 = inlined_call_operand.vmem [shape: f32[2,1,64], index: 10, kind: input, shape index: {}]
  %s11 = inlined_call_operand.vmem [shape: bf16[2,32,64], index: 11, kind: input, shape index: {}]
  %s12 = inlined_call_operand.vmem [shape: f32[2,1,32], index: 12, kind: input, shape index: {}]
  %s13 = inlined_call_operand.vmem [shape: f32[2,1,32], index: 13, kind: input, shape index: {}]
  %s14 = inlined_call_operand.vmem [shape: f32[2,1,32], index: 14, kind: input, shape index: {}]
  %s15 = inlined_call_operand.hbm [shape: f32[16,32], index: 15, kind: output, shape index: {}]
  %s16 = sld [smem:[#allocation0]]
  $region101: #{tpu_custom_call.1} parent=0
    _
  %s18 = ssub.s32 1, %s16
  %s19 = scalar_select 0, %s18, %s16
  $region1: #{tpu_custom_call.1} parent=0
    #allocation3 [shape = 'u8[8192]{0}', space=vmem, size = 0x2000, scoped, tag = 'output window, operand 0, single buffered']
    #allocation4 [shape = 's32[2]{0}', space=sflag, size = 0x8, scoped, tag = 'scoped memory for tpu_custom_call.1']
    %20 = vsyncpa [#allocation4], 0
    loop: start=0, step=1, limit=4
    $region2: #{tpu_custom_call.1} parent=1 // loop_pre_header
      _
    $region3: #{tpu_custom_call.1} parent=1 // loop_header
      %s22 = sphi 0, %s26
      %p23 = scmp.ge.s32.totalorder %s22, 4
      %s29 = sphi 0, %s41
      %s30 = sphi 0, %s37
      %s31 = sphi 0, %s29
      %s32 = sphi 0, %s30
      %s33 = sphi 0, %s31
      %s34 = sphi 0, %s32
      %s44 = sphi 0, %s46
      %s47 = sphi 0, %s44
      %s48 = sphi 0, %s47
      %s64 = sphi 0, %s48
      %s70 = sphi 0, %s72
      %s73 = sphi 0, %s70
      %s74 = sphi 0, %s73
      %s90 = sphi 0, %s74
      %s94 = sphi 0, %s94
      %s96 = sphi 0, %s94
      %s97 = sphi 0, %s96
      %s111 = sphi 0, %s97
      %s117 = sphi 0, %s119
      %s120 = sphi 0, %s117
      %s121 = sphi 0, %s120
      %s137 = sphi 0, %s121
      %s143 = sphi 0, %s145
      %s146 = sphi 0, %s143
      %s147 = sphi 0, %s146
      %s163 = sphi 0, %s147
      %s169 = sphi 0, %s171
      %s172 = sphi 0, %s169
      %s173 = sphi 0, %s172
      %s189 = sphi 0, %s173
      %s195 = sphi 0, %s197
      %s198 = sphi 0, %s195
      %s199 = sphi 0, %s198
      %s215 = sphi 0, %s199
      %s221 = sphi 0, %s223
      %s224 = sphi 0, %s221
      %s225 = sphi 0, %s224
      %s241 = sphi 0, %s225
      %s247 = sphi 0, %s249
      %s250 = sphi 0, %s247
      %s251 = sphi 0, %s250
      %s267 = sphi 0, %s251
      %s273 = sphi 0, %s275
      %s276 = sphi 0, %s273
      %s277 = sphi 0, %s276
      %s293 = sphi 0, %s277
      %s299 = sphi 0, %s301
      %s302 = sphi 0, %s299
      %s303 = sphi 0, %s302
      %s319 = sphi 0, %s303
      %s325 = sphi 0, %s327
      %s328 = sphi 0, %s325
      %s329 = sphi 0, %s328
      %s345 = sphi 0, %s329
      %s351 = sphi 0, %s353
      %s354 = sphi 0, %s351
      %s355 = sphi 0, %s354
      %s371 = sphi 0, %s355
      %s377 = sphi 0, %s379
      %s380 = sphi 0, %s377
      %s381 = sphi 0, %s380
      %s397 = sphi 0, %s381
      %s403 = sphi 0, %s405
      %s406 = sphi 0, %s403
      %s407 = sphi 0, %s406
      %s423 = sphi 0, %s407
      %s429 = sphi 0, %s431
      %s432 = sphi 0, %s429
      %s433 = sphi 0, %s432
      %s449 = sphi 0, %s433
    $region4: #{tpu_custom_call.1} parent=1 // loop_header_branch
      %25 = sbr.rel (%p23) target = $region8
    $region5: #{tpu_custom_call.1} parent=1 // loop_body
      %s27 = ssub.s32 %s22, 1
      %s28 = ssub.s32 %s22, 2
      %s35 = sadd.s32 1, %s30
      %p36 = scmp.ge.s32.totalorder %s35, 2
      %s37 = scalar_select %p36, 0, %s35
      %s38 = sadd.s32 1, %s29
      %s39 = scalar_select %p36, %s38, %s29
      %p40 = scmp.ge.s32.totalorder %s39, 1
      %s41 = scalar_select %p40, 0, %s39
      %s42 = ssub.s32 %s29, %s41
      %p43 = scmp.eq.s32.totalorder %s42, 0
      %s45 = sadd.s32 %s44, 1
      %s46 = scalar_select %p43, %s44, %s45
      %p49 = pneg %p43
      %p50 = scmp.eq.s32.totalorder %s22, 1
      %p51 = por %p49, %p50
      %p52 = scmp.ne.s32.totalorder %s44, %s47
      %p53 = scmp.eq.s32.totalorder %s22, 0
      %p54 = por %p52, %p53
      %p55 = scmp.ne.s32.totalorder %s44, %s47
      %p56 = scmp.eq.s32.totalorder %s27, 1
      %p57 = por %p55, %p56
      %p58 = scmp.ne.s32.totalorder %s47, %s48
      %p59 = scmp.eq.s32.totalorder %s27, 0
      %p60 = por %p58, %p59
      %p61 = scmp.ne.s32.totalorder %s47, %s48
      %p62 = scmp.eq.s32.totalorder %s28, 1
      %p63 = por %p61, %p62
      %p65 = scmp.ne.s32.totalorder %s48, %s64
      %p66 = scmp.eq.s32.totalorder %s28, 0
      %p67 = por %p65, %p66
      %s68 = ssub.s32 %s29, %s41
      %p69 = scmp.eq.s32.totalorder %s68, 0
      %s71 = sadd.s32 %s70, 1
      %s72 = scalar_select %p69, %s70, %s71
      %p75 = pneg %p69
      %p76 = scmp.eq.s32.totalorder %s22, 1
      %p77 = por %p75, %p76
      %p78 = scmp.ne.s32.totalorder %s70, %s73
      %p79 = scmp.eq.s32.totalorder %s22, 0
      %p80 = por %p78, %p79
      %p81 = scmp.ne.s32.totalorder %s70, %s73
      %p82 = scmp.eq.s32.totalorder %s27, 1
      %p83 = por %p81, %p82
      %p84 = scmp.ne.s32.totalorder %s73, %s74
      %p85 = scmp.eq.s32.totalorder %s27, 0
      %p86 = por %p84, %p85
      %p87 = scmp.ne.s32.totalorder %s73, %s74
      %p88 = scmp.eq.s32.totalorder %s28, 1
      %p89 = por %p87, %p88
      %p91 = scmp.ne.s32.totalorder %s74, %s90
      %p92 = scmp.eq.s32.totalorder %s28, 0
      %p93 = por %p91, %p92
      %s95 = sadd.s32 %s94, 1
      %p98 = scmp.eq.s32.totalorder %s22, 1
      %p99 = scmp.ne.s32.totalorder %s94, %s96
      %p100 = scmp.eq.s32.totalorder %s22, 0
      %p101 = por %p99, %p100
      %p102 = scmp.ne.s32.totalorder %s94, %s96
      %p103 = scmp.eq.s32.totalorder %s27, 1
      %p104 = por %p102, %p103
      %p105 = scmp.ne.s32.totalorder %s96, %s97
      %p106 = scmp.eq.s32.totalorder %s27, 0
      %p107 = por %p105, %p106
      %p108 = scmp.ne.s32.totalorder %s96, %s97
      %p109 = scmp.eq.s32.totalorder %s28, 1
      %p110 = por %p108, %p109
      %p112 = scmp.ne.s32.totalorder %s97, %s111
      %p113 = scmp.eq.s32.totalorder %s28, 0
      %p114 = por %p112, %p113
      %s115 = ssub.s32 %s30, %s37
      %p116 = scmp.eq.s32.totalorder %s115, 0
      %s118 = sadd.s32 %s117, 1
      %s119 = scalar_select %p116, %s117, %s118
      %p122 = pneg %p116
      %p123 = scmp.eq.s32.totalorder %s22, 1
      %p124 = por %p122, %p123
      %p125 = scmp.ne.s32.totalorder %s117, %s120
      %p126 = scmp.eq.s32.totalorder %s22, 0
      %p127 = por %p125, %p126
      %p128 = scmp.ne.s32.totalorder %s117, %s120
      %p129 = scmp.eq.s32.totalorder %s27, 1
      %p130 = por %p128, %p129
      %p131 = scmp.ne.s32.totalorder %s120, %s121
      %p132 = scmp.eq.s32.totalorder %s27, 0
      %p133 = por %p131, %p132
      %p134 = scmp.ne.s32.totalorder %s120, %s121
      %p135 = scmp.eq.s32.totalorder %s28, 1
      %p136 = por %p134, %p135
      %p138 = scmp.ne.s32.totalorder %s121, %s137
      %p139 = scmp.eq.s32.totalorder %s28, 0
      %p140 = por %p138, %p139
      %s141 = ssub.s32 %s30, %s37
      %p142 = scmp.eq.s32.totalorder %s141, 0
      %s144 = sadd.s32 %s143, 1
      %s145 = scalar_select %p142, %s143, %s144
      %p148 = pneg %p142
      %p149 = scmp.eq.s32.totalorder %s22, 1
      %p150 = por %p148, %p149
      %p151 = scmp.ne.s32.totalorder %s143, %s146
      %p152 = scmp.eq.s32.totalorder %s22, 0
      %p153 = por %p151, %p152
      %p154 = scmp.ne.s32.totalorder %s143, %s146
      %p155 = scmp.eq.s32.totalorder %s27, 1
      %p156 = por %p154, %p155
      %p157 = scmp.ne.s32.totalorder %s146, %s147
      %p158 = scmp.eq.s32.totalorder %s27, 0
      %p159 = por %p157, %p158
      %p160 = scmp.ne.s32.totalorder %s146, %s147
      %p161 = scmp.eq.s32.totalorder %s28, 1
      %p162 = por %p160, %p161
      %p164 = scmp.ne.s32.totalorder %s147, %s163
      %p165 = scmp.eq.s32.totalorder %s28, 0
      %p166 = por %p164, %p165
      %s167 = ssub.s32 %s30, %s37
      %p168 = scmp.eq.s32.totalorder %s167, 0
      %s170 = sadd.s32 %s169, 1
      %s171 = scalar_select %p168, %s169, %s170
      %p174 = pneg %p168
      %p175 = scmp.eq.s32.totalorder %s22, 1
      %p176 = por %p174, %p175
      %p177 = scmp.ne.s32.totalorder %s169, %s172
      %p178 = scmp.eq.s32.totalorder %s22, 0
      %p179 = por %p177, %p178
      %p180 = scmp.ne.s32.totalorder %s169, %s172
      %p181 = scmp.eq.s32.totalorder %s27, 1
      %p182 = por %p180, %p181
      %p183 = scmp.ne.s32.totalorder %s172, %s173
      %p184 = scmp.eq.s32.totalorder %s27, 0
      %p185 = por %p183, %p184
      %p186 = scmp.ne.s32.totalorder %s172, %s173
      %p187 = scmp.eq.s32.totalorder %s28, 1
      %p188 = por %p186, %p187
      %p190 = scmp.ne.s32.totalorder %s173, %s189
      %p191 = scmp.eq.s32.totalorder %s28, 0
      %p192 = por %p190, %p191
      %s193 = ssub.s32 %s30, %s37
      %p194 = scmp.eq.s32.totalorder %s193, 0
      %s196 = sadd.s32 %s195, 1
      %s197 = scalar_select %p194, %s195, %s196
      %p200 = pneg %p194
      %p201 = scmp.eq.s32.totalorder %s22, 1
      %p202 = por %p200, %p201
      %p203 = scmp.ne.s32.totalorder %s195, %s198
      %p204 = scmp.eq.s32.totalorder %s22, 0
      %p205 = por %p203, %p204
      %p206 = scmp.ne.s32.totalorder %s195, %s198
      %p207 = scmp.eq.s32.totalorder %s27, 1
      %p208 = por %p206, %p207
      %p209 = scmp.ne.s32.totalorder %s198, %s199
      %p210 = scmp.eq.s32.totalorder %s27, 0
      %p211 = por %p209, %p210
      %p212 = scmp.ne.s32.totalorder %s198, %s199
      %p213 = scmp.eq.s32.totalorder %s28, 1
      %p214 = por %p212, %p213
      %p216 = scmp.ne.s32.totalorder %s199, %s215
      %p217 = scmp.eq.s32.totalorder %s28, 0
      %p218 = por %p216, %p217
      %s219 = ssub.s32 %s30, %s37
      %p220 = scmp.eq.s32.totalorder %s219, 0
      %s222 = sadd.s32 %s221, 1
      %s223 = scalar_select %p220, %s221, %s222
      %p226 = pneg %p220
      %p227 = scmp.eq.s32.totalorder %s22, 1
      %p228 = por %p226, %p227
      %p229 = scmp.ne.s32.totalorder %s221, %s224
      %p230 = scmp.eq.s32.totalorder %s22, 0
      %p231 = por %p229, %p230
      %p232 = scmp.ne.s32.totalorder %s221, %s224
      %p233 = scmp.eq.s32.totalorder %s27, 1
      %p234 = por %p232, %p233
      %p235 = scmp.ne.s32.totalorder %s224, %s225
      %p236 = scmp.eq.s32.totalorder %s27, 0
      %p237 = por %p235, %p236
      %p238 = scmp.ne.s32.totalorder %s224, %s225
      %p239 = scmp.eq.s32.totalorder %s28, 1
      %p240 = por %p238, %p239
      %p242 = scmp.ne.s32.totalorder %s225, %s241
      %p243 = scmp.eq.s32.totalorder %s28, 0
      %p244 = por %p242, %p243
      %s245 = ssub.s32 %s30, %s37
      %p246 = scmp.eq.s32.totalorder %s245, 0
      %s248 = sadd.s32 %s247, 1
      %s249 = scalar_select %p246, %s247, %s248
      %p252 = pneg %p246
      %p253 = scmp.eq.s32.totalorder %s22, 1
      %p254 = por %p252, %p253
      %p255 = scmp.ne.s32.totalorder %s247, %s250
      %p256 = scmp.eq.s32.totalorder %s22, 0
      %p257 = por %p255, %p256
      %p258 = scmp.ne.s32.totalorder %s247, %s250
      %p259 = scmp.eq.s32.totalorder %s27, 1
      %p260 = por %p258, %p259
      %p261 = scmp.ne.s32.totalorder %s250, %s251
      %p262 = scmp.eq.s32.totalorder %s27, 0
      %p263 = por %p261, %p262
      %p264 = scmp.ne.s32.totalorder %s250, %s251
      %p265 = scmp.eq.s32.totalorder %s28, 1
      %p266 = por %p264, %p265
      %p268 = scmp.ne.s32.totalorder %s251, %s267
      %p269 = scmp.eq.s32.totalorder %s28, 0
      %p270 = por %p268, %p269
      %s271 = ssub.s32 %s30, %s37
      %p272 = scmp.eq.s32.totalorder %s271, 0
      %s274 = sadd.s32 %s273, 1
      %s275 = scalar_select %p272, %s273, %s274
      %p278 = pneg %p272
      %p279 = scmp.eq.s32.totalorder %s22, 1
      %p280 = por %p278, %p279
      %p281 = scmp.ne.s32.totalorder %s273, %s276
      %p282 = scmp.eq.s32.totalorder %s22, 0
      %p283 = por %p281, %p282
      %p284 = scmp.ne.s32.totalorder %s273, %s276
      %p285 = scmp.eq.s32.totalorder %s27, 1
      %p286 = por %p284, %p285
      %p287 = scmp.ne.s32.totalorder %s276, %s277
      %p288 = scmp.eq.s32.totalorder %s27, 0
      %p289 = por %p287, %p288
      %p290 = scmp.ne.s32.totalorder %s276, %s277
      %p291 = scmp.eq.s32.totalorder %s28, 1
      %p292 = por %p290, %p291
      %p294 = scmp.ne.s32.totalorder %s277, %s293
      %p295 = scmp.eq.s32.totalorder %s28, 0
      %p296 = por %p294, %p295
      %s297 = ssub.s32 %s30, %s37
      %p298 = scmp.eq.s32.totalorder %s297, 0
      %s300 = sadd.s32 %s299, 1
      %s301 = scalar_select %p298, %s299, %s300
      %p304 = pneg %p298
      %p305 = scmp.eq.s32.totalorder %s22, 1
      %p306 = por %p304, %p305
      %p307 = scmp.ne.s32.totalorder %s299, %s302
      %p308 = scmp.eq.s32.totalorder %s22, 0
      %p309 = por %p307, %p308
      %p310 = scmp.ne.s32.totalorder %s299, %s302
      %p311 = scmp.eq.s32.totalorder %s27, 1
      %p312 = por %p310, %p311
      %p313 = scmp.ne.s32.totalorder %s302, %s303
      %p314 = scmp.eq.s32.totalorder %s27, 0
      %p315 = por %p313, %p314
      %p316 = scmp.ne.s32.totalorder %s302, %s303
      %p317 = scmp.eq.s32.totalorder %s28, 1
      %p318 = por %p316, %p317
      %p320 = scmp.ne.s32.totalorder %s303, %s319
      %p321 = scmp.eq.s32.totalorder %s28, 0
      %p322 = por %p320, %p321
      %s323 = ssub.s32 %s30, %s37
      %p324 = scmp.eq.s32.totalorder %s323, 0
      %s326 = sadd.s32 %s325, 1
      %s327 = scalar_select %p324, %s325, %s326
      %p330 = pneg %p324
      %p331 = scmp.eq.s32.totalorder %s22, 1
      %p332 = por %p330, %p331
      %p333 = scmp.ne.s32.totalorder %s325, %s328
      %p334 = scmp.eq.s32.totalorder %s22, 0
      %p335 = por %p333, %p334
      %p336 = scmp.ne.s32.totalorder %s325, %s328
      %p337 = scmp.eq.s32.totalorder %s27, 1
      %p338 = por %p336, %p337
      %p339 = scmp.ne.s32.totalorder %s328, %s329
      %p340 = scmp.eq.s32.totalorder %s27, 0
      %p341 = por %p339, %p340
      %p342 = scmp.ne.s32.totalorder %s328, %s329
      %p343 = scmp.eq.s32.totalorder %s28, 1
      %p344 = por %p342, %p343
      %p346 = scmp.ne.s32.totalorder %s329, %s345
      %p347 = scmp.eq.s32.totalorder %s28, 0
      %p348 = por %p346, %p347
      %s349 = ssub.s32 %s30, %s37
      %p350 = scmp.eq.s32.totalorder %s349, 0
      %s352 = sadd.s32 %s351, 1
      %s353 = scalar_select %p350, %s351, %s352
      %p356 = pneg %p350
      %p357 = scmp.eq.s32.totalorder %s22, 1
      %p358 = por %p356, %p357
      %p359 = scmp.ne.s32.totalorder %s351, %s354
      %p360 = scmp.eq.s32.totalorder %s22, 0
      %p361 = por %p359, %p360
      %p362 = scmp.ne.s32.totalorder %s351, %s354
      %p363 = scmp.eq.s32.totalorder %s27, 1
      %p364 = por %p362, %p363
      %p365 = scmp.ne.s32.totalorder %s354, %s355
      %p366 = scmp.eq.s32.totalorder %s27, 0
      %p367 = por %p365, %p366
      %p368 = scmp.ne.s32.totalorder %s354, %s355
      %p369 = scmp.eq.s32.totalorder %s28, 1
      %p370 = por %p368, %p369
      %p372 = scmp.ne.s32.totalorder %s355, %s371
      %p373 = scmp.eq.s32.totalorder %s28, 0
      %p374 = por %p372, %p373
      %s375 = ssub.s32 %s30, %s37
      %p376 = scmp.eq.s32.totalorder %s375, 0
      %s378 = sadd.s32 %s377, 1
      %s379 = scalar_select %p376, %s377, %s378
      %p382 = pneg %p376
      %p383 = scmp.eq.s32.totalorder %s22, 1
      %p384 = por %p382, %p383
      %p385 = scmp.ne.s32.totalorder %s377, %s380
      %p386 = scmp.eq.s32.totalorder %s22, 0
      %p387 = por %p385, %p386
      %p388 = scmp.ne.s32.totalorder %s377, %s380
      %p389 = scmp.eq.s32.totalorder %s27, 1
      %p390 = por %p388, %p389
      %p391 = scmp.ne.s32.totalorder %s380, %s381
      %p392 = scmp.eq.s32.totalorder %s27, 0
      %p393 = por %p391, %p392
      %p394 = scmp.ne.s32.totalorder %s380, %s381
      %p395 = scmp.eq.s32.totalorder %s28, 1
      %p396 = por %p394, %p395
      %p398 = scmp.ne.s32.totalorder %s381, %s397
      %p399 = scmp.eq.s32.totalorder %s28, 0
      %p400 = por %p398, %p399
      %s401 = ssub.s32 %s30, %s37
      %p402 = scmp.eq.s32.totalorder %s401, 0
      %s404 = sadd.s32 %s403, 1
      %s405 = scalar_select %p402, %s403, %s404
      %p408 = pneg %p402
      %p409 = scmp.eq.s32.totalorder %s22, 1
      %p410 = por %p408, %p409
      %p411 = scmp.ne.s32.totalorder %s403, %s406
      %p412 = scmp.eq.s32.totalorder %s22, 0
      %p413 = por %p411, %p412
      %p414 = scmp.ne.s32.totalorder %s403, %s406
      %p415 = scmp.eq.s32.totalorder %s27, 1
      %p416 = por %p414, %p415
      %p417 = scmp.ne.s32.totalorder %s406, %s407
      %p418 = scmp.eq.s32.totalorder %s27, 0
      %p419 = por %p417, %p418
      %p420 = scmp.ne.s32.totalorder %s406, %s407
      %p421 = scmp.eq.s32.totalorder %s28, 1
      %p422 = por %p420, %p421
      %p424 = scmp.ne.s32.totalorder %s407, %s423
      %p425 = scmp.eq.s32.totalorder %s28, 0
      %p426 = por %p424, %p425
      %s427 = ssub.s32 %s29, %s41
      %p428 = scmp.eq.s32.totalorder %s427, 0
      %s430 = sadd.s32 %s429, 1
      %s431 = scalar_select %p428, %s429, %s430
      %p434 = pneg %p428
      %p435 = scmp.eq.s32.totalorder %s22, 1
      %p436 = por %p434, %p435
      %p437 = scmp.ne.s32.totalorder %s429, %s432
      %p438 = scmp.eq.s32.totalorder %s22, 0
      %p439 = por %p437, %p438
      %p440 = scmp.ne.s32.totalorder %s429, %s432
      %p441 = scmp.eq.s32.totalorder %s27, 1
      %p442 = por %p440, %p441
      %p443 = scmp.ne.s32.totalorder %s432, %s433
      %p444 = scmp.eq.s32.totalorder %s27, 0
      %p445 = por %p443, %p444
      %p446 = scmp.ne.s32.totalorder %s432, %s433
      %p447 = scmp.eq.s32.totalorder %s28, 1
      %p448 = por %p446, %p447
      %p450 = scmp.ne.s32.totalorder %s433, %s449
      %p451 = scmp.eq.s32.totalorder %s28, 0
      %p452 = por %p450, %p451
      %p453 = scmp.le.s32.totalorder 1, %s22
      %p454 = scmp.lt.s32.totalorder %s22, 3
      %p455 = pnand %p453, %p454
      %p456 = pneg %p455
      // Predicated region
      $region9: #{tpu_custom_call.1} parent=5 // pred_check
        _
      $region10: #{tpu_custom_call.1} parent=5 // pred_check_branch
        %458 = sbr.rel (%p455) target = $region12
      $region11: #{tpu_custom_call.1} parent=5 // pred_region
        %s459 = ssub.s32 %s22, 1
        // Predicated region
        $region13: #{tpu_custom_call.1} parent=11 // pred_check
          %p460 = pneg %p60
        $region14: #{tpu_custom_call.1} parent=11 // pred_check_branch
          %462 = sbr.rel (%p460) target = $region16
        $region15: #{tpu_custom_call.1} parent=11 // pred_region
          %s463 = smul.u32 2, %s31
          %p464 = scmp.lt.s32.totalorder %s463, 1
          %s465 = scalar_select %p464, %s463, 1
          %s466 = smul.addr %s465, 8
          %s467 = scalar_lea.vmem %s0, %s466
          %s468 = smul.u32 2, %s31
        $region16: #{tpu_custom_call.1} parent=11 // pred_fallthru
          _
        // Predicated region
        $region17: #{tpu_custom_call.1} parent=11 // pred_check
          %p469 = pneg %p86
        $region18: #{tpu_custom_call.1} parent=11 // pred_check_branch
          %471 = sbr.rel (%p469) target = $region20
        $region19: #{tpu_custom_call.1} parent=11 // pred_region
          %s472 = smul.u32 2, %s31
          %p473 = scmp.lt.s32.totalorder %s472, 1
          %s474 = scalar_select %p473, %s472, 1
          %s475 = scalar_lea.vmem %s1, %s474
          %s476 = smul.u32 2, %s31
        $region20: #{tpu_custom_call.1} parent=11 // pred_fallthru
          _
        // Predicated region
        $region21: #{tpu_custom_call.1} parent=11 // pred_check
          %p477 = pneg %p107
        $region22: #{tpu_custom_call.1} parent=11 // pred_check_branch
          %479 = sbr.rel (%p477) target = $region24
        $region23: #{tpu_custom_call.1} parent=11 // pred_region
          _
        $region24: #{tpu_custom_call.1} parent=11 // pred_fallthru
          _
      $region12: #{tpu_custom_call.1} parent=5 // pred_fallthru
        _
      %p480 = scmp.lt.s32.totalorder %s22, 2
      // Predicated region
      $region25: #{tpu_custom_call.1} parent=5 // pred_check
        %p481 = pneg %p480
      $region26: #{tpu_custom_call.1} parent=5 // pred_check_branch
        %483 = sbr.rel (%p481) target = $region28
      $region27: #{tpu_custom_call.1} parent=5 // pred_region
        // Predicated region
        $region29: #{tpu_custom_call.1} parent=27 // pred_check
          %p484 = pneg %p127
        $region30: #{tpu_custom_call.1} parent=27 // pred_check_branch
          %486 = sbr.rel (%p484) target = $region32
        $region31: #{tpu_custom_call.1} parent=27 // pred_region
          %p487 = scmp.lt.s32.totalorder %s30, 1
          %s488 = scalar_select %p487, %s30, 1
          %s489 = smul.addr %s488, 12
          %s490 = smul.addr %s489, 4
          %s491 = scalar_lea.vmem %s3, %s490
        $region32: #{tpu_custom_call.1} parent=27 // pred_fallthru
          _
        // Predicated region
        $region33: #{tpu_custom_call.1} parent=27 // pred_check
          %p492 = pneg %p153
        $region34: #{tpu_custom_call.1} parent=27 // pred_check_branch
          %494 = sbr.rel (%p492) target = $region36
        $region35: #{tpu_custom_call.1} parent=27 // pred_region
          %p495 = scmp.lt.s32.totalorder %s30, 1
          %s496 = scalar_select %p495, %s30, 1
          %s497 = scalar_lea.vmem %s4, %s496
        $region36: #{tpu_custom_call.1} parent=27 // pred_fallthru
          _
        // Predicated region
        $region37: #{tpu_custom_call.1} parent=27 // pred_check
          %p498 = pneg %p179
        $region38: #{tpu_custom_call.1} parent=27 // pred_check_branch
          %500 = sbr.rel (%p498) target = $region40
        $region39: #{tpu_custom_call.1} parent=27 // pred_region
          %p501 = scmp.lt.s32.totalorder %s30, 1
          %s502 = scalar_select %p501, %s30, 1
          %s503 = smul.addr %s502, 4
          %s504 = smul.addr %s503, 4
          %s505 = scalar_lea.vmem %s5, %s504
        $region40: #{tpu_custom_call.1} parent=27 // pred_fallthru
          _
        // Predicated region
        $region41: #{tpu_custom_call.1} parent=27 // pred_check
          %p506 = pneg %p205
        $region42: #{tpu_custom_call.1} parent=27 // pred_check_branch
          %508 = sbr.rel (%p506) target = $region44
        $region43: #{tpu_custom_call.1} parent=27 // pred_region
          %p509 = scmp.lt.s32.totalorder %s30, 1
          %s510 = scalar_select %p509, %s30, 1
          %s511 = scalar_lea.vmem %s6, %s510
        $region44: #{tpu_custom_call.1} parent=27 // pred_fallthru
          _
        // Predicated region
        $region45: #{tpu_custom_call.1} parent=27 // pred_check
          %p512 = pneg %p231
        $region46: #{tpu_custom_call.1} parent=27 // pred_check_branch
          %514 = sbr.rel (%p512) target = $region48
        $region47: #{tpu_custom_call.1} parent=27 // pred_region
          %p515 = scmp.lt.s32.totalorder %s30, 1
          %s516 = scalar_select %p515, %s30, 1
          %s517 = scalar_lea.vmem %s7, %s516
        $region48: #{tpu_custom_call.1} parent=27 // pred_fallthru
          _
        // Predicated region
        $region49: #{tpu_custom_call.1} parent=27 // pred_check
          %p518 = pneg %p257
        $region50: #{tpu_custom_call.1} parent=27 // pred_check_branch
          %520 = sbr.rel (%p518) target = $region52
        $region51: #{tpu_custom_call.1} parent=27 // pred_region
          %p521 = scmp.lt.s32.totalorder %s30, 1
          %s522 = scalar_select %p521, %s30, 1
          %s523 = scalar_lea.vmem %s8, %s522
        $region52: #{tpu_custom_call.1} parent=27 // pred_fallthru
          _
        // Predicated region
        $region53: #{tpu_custom_call.1} parent=27 // pred_check
          %p524 = pneg %p283
        $region54: #{tpu_custom_call.1} parent=27 // pred_check_branch
          %526 = sbr.rel (%p524) target = $region56
        $region55: #{tpu_custom_call.1} parent=27 // pred_region
          %p527 = scmp.lt.s32.totalorder %s30, 1
          %s528 = scalar_select %p527, %s30, 1
          %s529 = smul.addr %s528, 8
          %s530 = smul.addr %s529, 4
          %s531 = scalar_lea.vmem %s9, %s530
        $region56: #{tpu_custom_call.1} parent=27 // pred_fallthru
          _
        // Predicated region
        $region57: #{tpu_custom_call.1} parent=27 // pred_check
          %p532 = pneg %p309
        $region58: #{tpu_custom_call.1} parent=27 // pred_check_branch
          %534 = sbr.rel (%p532) target = $region60
        $region59: #{tpu_custom_call.1} parent=27 // pred_region
          %p535 = scmp.lt.s32.totalorder %s30, 1
          %s536 = scalar_select %p535, %s30, 1
          %s537 = scalar_lea.vmem %s10, %s536
        $region60: #{tpu_custom_call.1} parent=27 // pred_fallthru
          _
        // Predicated region
        $region61: #{tpu_custom_call.1} parent=27 // pred_check
          %p538 = pneg %p335
        $region62: #{tpu_custom_call.1} parent=27 // pred_check_branch
          %540 = sbr.rel (%p538) target = $region64
        $region63: #{tpu_custom_call.1} parent=27 // pred_region
          %p541 = scmp.lt.s32.totalorder %s30, 1
          %s542 = scalar_select %p541, %s30, 1
          %s543 = smul.addr %s542, 4
          %s544 = smul.addr %s543, 4
          %s545 = scalar_lea.vmem %s11, %s544
        $region64: #{tpu_custom_call.1} parent=27 // pred_fallthru
          _
        // Predicated region
        $region65: #{tpu_custom_call.1} parent=27 // pred_check
          %p546 = pneg %p361
        $region66: #{tpu_custom_call.1} parent=27 // pred_check_branch
          %548 = sbr.rel (%p546) target = $region68
        $region67: #{tpu_custom_call.1} parent=27 // pred_region
          %p549 = scmp.lt.s32.totalorder %s30, 1
          %s550 = scalar_select %p549, %s30, 1
          %s551 = scalar_lea.vmem %s12, %s550
        $region68: #{tpu_custom_call.1} parent=27 // pred_fallthru
          _
        // Predicated region
        $region69: #{tpu_custom_call.1} parent=27 // pred_check
          %p552 = pneg %p387
        $region70: #{tpu_custom_call.1} parent=27 // pred_check_branch
          %554 = sbr.rel (%p552) target = $region72
        $region71: #{tpu_custom_call.1} parent=27 // pred_region
          %p555 = scmp.lt.s32.totalorder %s30, 1
          %s556 = scalar_select %p555, %s30, 1
          %s557 = scalar_lea.vmem %s13, %s556
        $region72: #{tpu_custom_call.1} parent=27 // pred_fallthru
          _
        // Predicated region
        $region73: #{tpu_custom_call.1} parent=27 // pred_check
          %p558 = pneg %p413
        $region74: #{tpu_custom_call.1} parent=27 // pred_check_branch
          %560 = sbr.rel (%p558) target = $region76
        $region75: #{tpu_custom_call.1} parent=27 // pred_region
          %p561 = scmp.lt.s32.totalorder %s30, 1
          %s562 = scalar_select %p561, %s30, 1
          %s563 = scalar_lea.vmem %s14, %s562
        $region76: #{tpu_custom_call.1} parent=27 // pred_fallthru
          _
      $region28: #{tpu_custom_call.1} parent=5 // pred_fallthru
        _
      %p564 = scmp.le.s32.totalorder 1, %s22
      %p565 = scmp.lt.s32.totalorder %s22, 3
      %p566 = pnand %p564, %p565
      %p567 = pneg %p566
      // Predicated region
      $region77: #{tpu_custom_call.1} parent=5 // pred_check
        _
      $region78: #{tpu_custom_call.1} parent=5 // pred_check_branch
        %569 = sbr.rel (%p566) target = $region80
      $region79: #{tpu_custom_call.1} parent=5 // pred_region
        %s570 = ssub.s32 %s22, 1
        %s571 = smul.u32 2, %s31
        %p572 = scmp.lt.s32.totalorder %s571, 1
        %s573 = scalar_select %p572, %s571, 1
        %s574 = smul.addr %s573, 8
        %s575 = scalar_lea.vmem %s0, %s574
        %p576 = pneg %p60
        %p577 = pneg %p57
        %s578 = smul.u32 2, %s31
        %p579 = scmp.lt.s32.totalorder %s578, 1
        %s580 = scalar_select %p579, %s578, 1
        %s581 = scalar_lea.vmem %s1, %s580
        %p582 = pneg %p86
        %p583 = pneg %p83
        %p584 = pneg %p107
        %p585 = pneg %p104
        %p586 = scmp.lt.s32.totalorder %s32, 1
        %s587 = scalar_select %p586, %s32, 1
        %s588 = smul.addr %s587, 12
        %s589 = smul.addr %s588, 4
        %s590 = scalar_lea.vmem %s3, %s589
        %p591 = pneg %p133
        %p592 = pneg %p130
        %p593 = scmp.lt.s32.totalorder %s32, 1
        %s594 = scalar_select %p593, %s32, 1
        %s595 = scalar_lea.vmem %s4, %s594
        %p596 = pneg %p159
        %p597 = pneg %p156
        %p598 = scmp.lt.s32.totalorder %s32, 1
        %s599 = scalar_select %p598, %s32, 1
        %s600 = smul.addr %s599, 4
        %s601 = smul.addr %s600, 4
        %s602 = scalar_lea.vmem %s5, %s601
        %p603 = pneg %p185
        %p604 = pneg %p182
        %p605 = scmp.lt.s32.totalorder %s32, 1
        %s606 = scalar_select %p605, %s32, 1
        %s607 = scalar_lea.vmem %s6, %s606
        %p608 = pneg %p211
        %p609 = pneg %p208
        %p610 = scmp.lt.s32.totalorder %s32, 1
        %s611 = scalar_select %p610, %s32, 1
        %s612 = scalar_lea.vmem %s7, %s611
        %p613 = pneg %p237
        %p614 = pneg %p234
        %p615 = scmp.lt.s32.totalorder %s32, 1
        %s616 = scalar_select %p615, %s32, 1
        %s617 = scalar_lea.vmem %s8, %s616
        %p618 = pneg %p263
        %p619 = pneg %p260
        %p620 = scmp.lt.s32.totalorder %s32, 1
        %s621 = scalar_select %p620, %s32, 1
        %s622 = smul.addr %s621, 8
        %s623 = smul.addr %s622, 4
        %s624 = scalar_lea.vmem %s9, %s623
        %p625 = pneg %p289
        %p626 = pneg %p286
        %p627 = scmp.lt.s32.totalorder %s32, 1
        %s628 = scalar_select %p627, %s32, 1
        %s629 = scalar_lea.vmem %s10, %s628
        %p630 = pneg %p315
        %p631 = pneg %p312
        %p632 = scmp.lt.s32.totalorder %s32, 1
        %s633 = scalar_select %p632, %s32, 1
        %s634 = smul.addr %s633, 4
        %s635 = smul.addr %s634, 4
        %s636 = scalar_lea.vmem %s11, %s635
        %p637 = pneg %p341
        %p638 = pneg %p338
        %p639 = scmp.lt.s32.totalorder %s32, 1
        %s640 = scalar_select %p639, %s32, 1
        %s641 = scalar_lea.vmem %s12, %s640
        %p642 = pneg %p367
        %p643 = pneg %p364
        %p644 = scmp.lt.s32.totalorder %s32, 1
        %s645 = scalar_select %p644, %s32, 1
        %s646 = scalar_lea.vmem %s13, %s645
        %p647 = pneg %p393
        %p648 = pneg %p390
        %p649 = scmp.lt.s32.totalorder %s32, 1
        %s650 = scalar_select %p649, %s32, 1
        %s651 = scalar_lea.vmem %s14, %s650
        %p652 = pneg %p419
        %p653 = pneg %p416
        %p654 = pneg %p445
        %p655 = pneg %p442
        %s656 = smul.u32 2, %s31
        %p657 = scmp.lt.s32.totalorder %s656, 1
        %s658 = scalar_select %p657, %s656, 1
        %s659 = smul.addr %s658, 8
        %s660 = scalar_lea.vmem %s0, %s659
        %s661 = smul.u32 2, %s31
        %s662 = smul.u32 2, %s31
        %p663 = scmp.lt.s32.totalorder %s662, 1
        %s664 = scalar_select %p663, %s662, 1
        %s665 = scalar_lea.vmem %s1, %s664
        %s666 = smul.u32 2, %s31
        %p667 = scmp.lt.s32.totalorder %s32, 1
        %s668 = scalar_select %p667, %s32, 1
        %s669 = smul.addr %s668, 12
        %s670 = smul.addr %s669, 4
        %s671 = scalar_lea.vmem %s3, %s670
        %p672 = scmp.lt.s32.totalorder %s32, 1
        %s673 = scalar_select %p672, %s32, 1
        %s674 = scalar_lea.vmem %s4, %s673
        %p675 = scmp.lt.s32.totalorder %s32, 1
        %s676 = scalar_select %p675, %s32, 1
        %s677 = smul.addr %s676, 4
        %s678 = smul.addr %s677, 4
        %s679 = scalar_lea.vmem %s5, %s678
        %p680 = scmp.lt.s32.totalorder %s32, 1
        %s681 = scalar_select %p680, %s32, 1
        %s682 = scalar_lea.vmem %s6, %s681
        %p683 = scmp.lt.s32.totalorder %s32, 1
        %s684 = scalar_select %p683, %s32, 1
        %s685 = scalar_lea.vmem %s7, %s684
        %p686 = scmp.lt.s32.totalorder %s32, 1
        %s687 = scalar_select %p686, %s32, 1
        %s688 = scalar_lea.vmem %s8, %s687
        %p689 = scmp.lt.s32.totalorder %s32, 1
        %s690 = scalar_select %p689, %s32, 1
        %s691 = smul.addr %s690, 8
        %s692 = smul.addr %s691, 4
        %s693 = scalar_lea.vmem %s9, %s692
        %p694 = scmp.lt.s32.totalorder %s32, 1
        %s695 = scalar_select %p694, %s32, 1
        %s696 = scalar_lea.vmem %s10, %s695
        %p697 = scmp.lt.s32.totalorder %s32, 1
        %s698 = scalar_select %p697, %s32, 1
        %s699 = smul.addr %s698, 4
        %s700 = smul.addr %s699, 4
        %s701 = scalar_lea.vmem %s11, %s700
        %p702 = scmp.lt.s32.totalorder %s32, 1
        %s703 = scalar_select %p702, %s32, 1
        %s704 = scalar_lea.vmem %s12, %s703
        %p705 = scmp.lt.s32.totalorder %s32, 1
        %s706 = scalar_select %p705, %s32, 1
        %s707 = scalar_lea.vmem %s13, %s706
        %p708 = scmp.lt.s32.totalorder %s32, 1
        %s709 = scalar_select %p708, %s32, 1
        %s710 = scalar_lea.vmem %s14, %s709
        %s711 = smul.u32 2, %s31
        %p713 = scmp.eq.s32.totalorder %s32, 0
        // Predicated region
        $region81: #{tpu_custom_call.1} parent=79 // pred_check
          %p714 = pneg %p713
        $region82: #{tpu_custom_call.1} parent=79 // pred_check_branch
          %716 = sbr.rel (%p714) target = $region84
        $region83: #{tpu_custom_call.1} parent=79 // pred_region
          %v717 = vld [vmem:[%s660] sm:$0xff]
          %v718 = vld [vmem:[%s660 + $0x8] sm:$0xff]
          %v719 = vld [vmem:[%s665] sm:$0x1]
          %v720 = vld [vmem:[%s665 + $0x1] sm:$0x1]
          %v721 = vmul.f32 %v717, 5.656854
          %v723 = vlaneseq
          %v724 = vshrl.u32 %v723, 7
          %v725 = vsub.s32 0, %v724
          %v726 = vrot.slane %v719, %v725
          %v728 = vadd.f32 %v721, %v726
          %vm729 = vcmask 261120
          %730 = vst.msk [vmem:[#allocation2] sm:$0xff] %vm729, %v728
          %v731 = vmul.f32 %v718, 5.656854
          %v733 = vlaneseq
          %v734 = vshrl.u32 %v733, 7
          %v735 = vsub.s32 0, %v734
          %v736 = vrot.slane %v720, %v735
          %v738 = vadd.f32 %v731, %v736
          %739 = vst.msk [vmem:[#allocation2 + $0x8] sm:$0xff] %vm729, %v738
        $region84: #{tpu_custom_call.1} parent=79 // pred_fallthru
          _
        %v740 = vld [vmem:[#allocation2] sm:$0xff]
        %v741 = vld [vmem:[#allocation2 + $0x8] sm:$0xff]
        %v742 = vpack.c.bf16 %v741, %v740
        %v743 = vld [vmem:[%s671] sm:$0xf]
        %v744 = vld [vmem:[%s671 + $0x4] sm:$0xf]
        %v745 = vld [vmem:[%s671 + $0x8] sm:$0xf]
        %v746 = vld [vmem:[%s671 + $0xc] sm:$0xf]
        %v747 = vld [vmem:[%s671 + $0x10] sm:$0xf]
        %v748 = vld [vmem:[%s671 + $0x14] sm:$0xf]
        %v749 = vld [vmem:[%s671 + $0x18] sm:$0xf]
        %v750 = vld [vmem:[%s671 + $0x1c] sm:$0xf]
        %v751 = vld [vmem:[%s671 + $0x20] sm:$0xf]
        %v752 = vld [vmem:[%s671 + $0x24] sm:$0xf]
        %v753 = vld [vmem:[%s671 + $0x28] sm:$0xf]
        %v754 = vld [vmem:[%s671 + $0x2c] sm:$0xf]
        %v755 = vld [vmem:[%s674] sm:$0x1]
        %v757 = vlaneseq
        %v758 = vshrl.u32 %v757, 7
        %v759 = vsub.s32 0, %v758
        %v760 = vrot.slane %v755, %v759
        %v774 = vunpack.c.l.b16 %v743
        %v775 = vunpack.c.l.b16 %v744
        %v776 = vunpack.c.l.b16 %v745
        %v777 = vunpack.c.l.b16 %v746
        %v778 = vunpack.c.l.b16 %v747
        %v779 = vunpack.c.l.b16 %v748
        %v780 = vunpack.c.l.b16 %v749
        %v781 = vunpack.c.l.b16 %v750
        %v782 = vunpack.c.l.b16 %v751
        %v783 = vunpack.c.l.b16 %v752
        %v784 = vunpack.c.l.b16 %v753
        %v785 = vunpack.c.l.b16 %v754
        %v786 = vpack.c.b16 %v775, %v774
        %v787 = vpack.c.b16 %v777, %v776
        %v788 = vpack.c.b16 %v779, %v778
        %v789 = vpack.c.b16 %v781, %v780
        %v790 = vpack.c.b16 %v783, %v782
        %v791 = vpack.c.b16 %v785, %v784
        %vm792 = vcmask 261120
        %v794 = vsel %vm792, %v742, 0
        %v797 = vsel %vm792, %v786, 0
        %v800 = vsel %vm792, %v787, 0
        %v803 = vsel %vm792, %v788, 0
        %v806 = vsel %vm792, %v789, 0
        %v809 = vsel %vm792, %v790, 0
        %v812 = vsel %vm792, %v791, 0
        %814 = vmatprep.subr.bf16.mxu0 0
        %815 = vmatpush1.bf16.xpose.msra.mxu0 %v797
        %816 = vmatprep.subr.bf16.mxu0 0
        %817 = vmatpush1.bf16.xpose.msra.mxu0 %v800
        %818 = vmatprep.subr.bf16.mxu0 0
        %819 = vmatpush1.bf16.xpose.msra.mxu0 %v803
        %820 = vmatprep.subr.bf16.mxu0 0
        %821 = vmatpush1.bf16.xpose.msra.mxu0 %v806
        %822 = vmatprep.subr.bf16.mxu0 0
        %823 = vmatpush1.bf16.xpose.msra.mxu0 %v809
        %824 = vmatprep.subr.bf16.mxu0 0
        %825 = vmatpush1.bf16.xpose.msra.mxu0 %v812
        %826 = vmatprep.subr.bf16.mxu0 0
        %827 = vmatpush1.bf16.xpose.msra.mxu0 0
        %828 = vmatprep.subr.bf16.mxu0 0
        %829 = vmatpush1.bf16.xpose.msra.mxu0 0
        %830 = vmatprep.subr.bf16.mxu0 0
        %831 = vmatpush1.bf16.xpose.msra.mxu0 0
        %832 = vmatprep.subr.bf16.mxu0 0
        %833 = vmatpush1.bf16.xpose.msra.mxu0 0
        %834 = vmatprep.subr.bf16.mxu0 0
        %835 = vmatpush1.bf16.xpose.msra.mxu0 0
        %836 = vmatprep.subr.bf16.mxu0 0
        %837 = vmatpush1.bf16.xpose.msra.mxu0 0
        %838 = vmatprep.subr.bf16.mxu0 0
        %839 = vmatpush1.bf16.xpose.msra.mxu0 0
        %840 = vmatprep.subr.bf16.mxu0 0
        %841 = vmatpush1.bf16.xpose.msra.mxu0 0
        %842 = vmatprep.subr.bf16.mxu0 0
        %843 = vmatpush1.bf16.xpose.msra.mxu0 0
        %844 = vmatprep.subr.bf16.mxu0 0
        %845 = vmatpush1.bf16.xpose.msra.mxu0 0
        %846 = vmatprep.mubr.bf16.mxu0 0
        %847 = vmatmul.mubr.bf16.gmra.mrb[0].mxu0 %v794
        %v848 = vpop.f32.mrb[0].mxu0
        %v849 = vadd.f32 %v760, %v848
        %v850 = vpop.f32.mrb[0].mxu0
        %v851 = vpop.f32.mrb[0].mxu0
        %v852 = vadd.f32 %v760, %v851
        %v853 = vpop.f32.mrb[0].mxu0
        %854 = vdwg.mxu0
        %v855 = vld [vmem:[%s2] sm:$0xff]
        %v856 = vpack.c.bf16 %v849, %v849
        %v857 = vpack.c.bf16 %v852, %v852
        %859 = vrot.lane.b32.xlu0 %v856, 96
        %v860 = vpop.permute.xlu0 %859
        %vm861 = vcmask 64512
        %v863 = vsel %vm861, %v856, 0
        %v866 = vsel %vm861, %v860, 0
        %868 = vmatprep.subr.bf16.mxu0 0
        %869 = vmatpush1.bf16.xpose.msra.mxu0 %v866
        %870 = vmatprep.subr.bf16.mxu0 0
        %871 = vmatpush1.bf16.xpose.msra.mxu0 0
        %872 = vmatprep.subr.bf16.mxu0 0
        %873 = vmatpush1.bf16.xpose.msra.mxu0 0
        %874 = vmatprep.subr.bf16.mxu0 0
        %875 = vmatpush1.bf16.xpose.msra.mxu0 0
        %876 = vmatprep.subr.bf16.mxu0 0
        %877 = vmatpush1.bf16.xpose.msra.mxu0 0
        %878 = vmatprep.subr.bf16.mxu0 0
        %879 = vmatpush1.bf16.xpose.msra.mxu0 0
        %880 = vmatprep.subr.bf16.mxu0 0
        %881 = vmatpush1.bf16.xpose.msra.mxu0 0
        %882 = vmatprep.subr.bf16.mxu0 0
        %883 = vmatpush1.bf16.xpose.msra.mxu0 0
        %884 = vmatprep.subr.bf16.mxu0 0
        %885 = vmatpush1.bf16.xpose.msra.mxu0 0
        %886 = vmatprep.subr.bf16.mxu0 0
        %887 = vmatpush1.bf16.xpose.msra.mxu0 0
        %888 = vmatprep.subr.bf16.mxu0 0
        %889 = vmatpush1.bf16.xpose.msra.mxu0 0
        %890 = vmatprep.subr.bf16.mxu0 0
        %891 = vmatpush1.bf16.xpose.msra.mxu0 0
        %892 = vmatprep.subr.bf16.mxu0 0
        %893 = vmatpush1.bf16.xpose.msra.mxu0 0
        %894 = vmatprep.subr.bf16.mxu0 0
        %895 = vmatpush1.bf16.xpose.msra.mxu0 0
        %896 = vmatprep.subr.bf16.mxu0 0
        %897 = vmatpush1.bf16.xpose.msra.mxu0 0
        %898 = vmatprep.subr.bf16.mxu0 0
        %899 = vmatpush1.bf16.xpose.msra.mxu0 0
        %900 = vmatprep.mubr.bf16.mxu0 0
        %901 = vmatmul.mubr.bf16.gmra.mrb[0].mxu0 %v863
        %v902 = vpop.f32.mrb[0].mxu0
        %v903 = vadd.f32 %v855, %v902
        %v904 = vpop.f32.mrb[0].mxu0
        %v905 = vpop.f32.mrb[0].mxu0
        %v906 = vpop.f32.mrb[0].mxu0
        %907 = vdwg.mxu0
        %909 = vrot.lane.b32.xlu0 %v857, 96
        %v910 = vpop.permute.xlu0 %909
        %v912 = vsel %vm861, %v857, 0
        %v915 = vsel %vm861, %v910, 0
        %917 = vmatprep.subr.bf16.mxu0 0
        %918 = vmatpush1.bf16.xpose.msra.mxu0 %v915
        %919 = vmatprep.subr.bf16.mxu0 0
        %920 = vmatpush1.bf16.xpose.msra.mxu0 0
        %921 = vmatprep.subr.bf16.mxu0 0
        %922 = vmatpush1.bf16.xpose.msra.mxu0 0
        %923 = vmatprep.subr.bf16.mxu0 0
        %924 = vmatpush1.bf16.xpose.msra.mxu0 0
        %925 = vmatprep.subr.bf16.mxu0 0
        %926 = vmatpush1.bf16.xpose.msra.mxu0 0
        %927 = vmatprep.subr.bf16.mxu0 0
        %928 = vmatpush1.bf16.xpose.msra.mxu0 0
        %929 = vmatprep.subr.bf16.mxu0 0
        %930 = vmatpush1.bf16.xpose.msra.mxu0 0
        %931 = vmatprep.subr.bf16.mxu0 0
        %932 = vmatpush1.bf16.xpose.msra.mxu0 0
        %933 = vmatprep.subr.bf16.mxu0 0
        %934 = vmatpush1.bf16.xpose.msra.mxu0 0
        %935 = vmatprep.subr.bf16.mxu0 0
        %936 = vmatpush1.bf16.xpose.msra.mxu0 0
        %937 = vmatprep.subr.bf16.mxu0 0
        %938 = vmatpush1.bf16.xpose.msra.mxu0 0
        %939 = vmatprep.subr.bf16.mxu0 0
        %940 = vmatpush1.bf16.xpose.msra.mxu0 0
        %941 = vmatprep.subr.bf16.mxu0 0
        %942 = vmatpush1.bf16.xpose.msra.mxu0 0
        %943 = vmatprep.subr.bf16.mxu0 0
        %944 = vmatpush1.bf16.xpose.msra.mxu0 0
        %945 = vmatprep.subr.bf16.mxu0 0
        %946 = vmatpush1.bf16.xpose.msra.mxu0 0
        %947 = vmatprep.subr.bf16.mxu0 0
        %948 = vmatpush1.bf16.xpose.msra.mxu0 0
        %949 = vmatprep.mubr.bf16.mxu0 0
        %950 = vmatmul.mubr.bf16.gmra.mrb[0].mxu0 %v912
        %v951 = vpop.f32.mrb[0].mxu0
        %v952 = vadd.f32 %v855, %v951
        %v953 = vpop.f32.mrb[0].mxu0
        %v954 = vpop.f32.mrb[0].mxu0
        %v955 = vpop.f32.mrb[0].mxu0
        %956 = vdwg.mxu0
        %v957 = vsel %vm861, %v903, -inf
        %958 = vmax.xlane.f32.xlu0 %v957
        %v959 = vpop.xlane.xlu0 %958
        %v960 = vsel %vm861, %v952, -inf
        %961 = vmax.xlane.f32.xlu0 %v960
        %v962 = vpop.xlane.xlu0 %961
        %v963 = vsub.f32 %v903, %v959
        %v964 = vsub.f32 %v952, %v962
        %v965 = vmul.f32 %v963, 1.442695
        %v966 = vpow.pop %v965
        %v967 = vmul.f32 %v964, 1.442695
        %v968 = vpow.pop %v967
        %v969 = vsel %vm861, %v966, 0.0
        %970 = vadd.xlane.f32.xlu0 %v969
        %v971 = vpop.xlane.xlu0 %970
        %v972 = vsel %vm861, %v968, 0.0
        %973 = vadd.xlane.f32.xlu0 %v972
        %v974 = vpop.xlane.xlu0 %973
        %v975 = vrcp.pop %v971
        %v976 = vmul.f32 %v966, %v975
        %v977 = vrcp.pop %v974
        %v978 = vmul.f32 %v968, %v977
        %v979 = vpack.c.bf16 %v976, %v976
        %v980 = vpack.c.bf16 %v978, %v978
        %981 = vrot.lane.b32.xlu0 %v856, 64
        %v982 = vpop.permute.xlu0 %981
        %v984 = vsel %vm861, %v979, 0
        %vm986 = vcmask 1043456
        %v988 = vsel %vm986, %v982, 0
        %990 = vmatprep.subr.bf16.mxu0 0
        %991 = vmatpush1.bf16.msra.mxu0 %v988
        %992 = vmatprep.subr.bf16.mxu0 0
        %993 = vmatpush1.bf16.msra.mxu0 0
        %994 = vmatprep.subr.bf16.mxu0 0
        %995 = vmatpush1.bf16.msra.mxu0 0
        %996 = vmatprep.subr.bf16.mxu0 0
        %997 = vmatpush1.bf16.msra.mxu0 0
        %998 = vmatprep.subr.bf16.mxu0 0
        %999 = vmatpush1.bf16.msra.mxu0 0
        %1000 = vmatprep.subr.bf16.mxu0 0
        %1001 = vmatpush1.bf16.msra.mxu0 0
        %1002 = vmatprep.subr.bf16.mxu0 0
        %1003 = vmatpush1.bf16.msra.mxu0 0
        %1004 = vmatprep.subr.bf16.mxu0 0
        %1005 = vmatpush1.bf16.msra.mxu0 0
        %1006 = vmatprep.subr.bf16.mxu0 0
        %1007 = vmatpush1.bf16.msra.mxu0 0
        %1008 = vmatprep.subr.bf16.mxu0 0
        %1009 = vmatpush1.bf16.msra.mxu0 0
        %1010 = vmatprep.subr.bf16.mxu0 0
        %1011 = vmatpush1.bf16.msra.mxu0 0
        %1012 = vmatprep.subr.bf16.mxu0 0
        %1013 = vmatpush1.bf16.msra.mxu0 0
        %1014 = vmatprep.subr.bf16.mxu0 0
        %1015 = vmatpush1.bf16.msra.mxu0 0
        %1016 = vmatprep.subr.bf16.mxu0 0
        %1017 = vmatpush1.bf16.msra.mxu0 0
        %1018 = vmatprep.subr.bf16.mxu0 0
        %1019 = vmatpush1.bf16.msra.mxu0 0
        %1020 = vmatprep.subr.bf16.mxu0 0
        %1021 = vmatpush1.bf16.msra.mxu0 0
        %1022 = vmatprep.mubr.bf16.mxu0 0
        %1023 = vmatmul.mubr.bf16.gmra.mrb[0].mxu0 %v984
        %v1024 = vpop.f32.mrb[0].mxu0
        %v1025 = vadd.f32 0.0, %v1024
        %v1026 = vpop.f32.mrb[0].mxu0
        %v1027 = vpop.f32.mrb[0].mxu0
        %v1028 = vpop.f32.mrb[0].mxu0
        %1029 = vdwg.mxu0
        %1030 = vrot.lane.b32.xlu0 %v857, 64
        %v1031 = vpop.permute.xlu0 %1030
        %v1033 = vsel %vm861, %v980, 0
        %v1036 = vsel %vm986, %v1031, 0
        %1038 = vmatprep.subr.bf16.mxu0 0
        %1039 = vmatpush1.bf16.msra.mxu0 %v1036
        %1040 = vmatprep.subr.bf16.mxu0 0
        %1041 = vmatpush1.bf16.msra.mxu0 0
        %1042 = vmatprep.subr.bf16.mxu0 0
        %1043 = vmatpush1.bf16.msra.mxu0 0
        %1044 = vmatprep.subr.bf16.mxu0 0
        %1045 = vmatpush1.bf16.msra.mxu0 0
        %1046 = vmatprep.subr.bf16.mxu0 0
        %1047 = vmatpush1.bf16.msra.mxu0 0
        %1048 = vmatprep.subr.bf16.mxu0 0
        %1049 = vmatpush1.bf16.msra.mxu0 0
        %1050 = vmatprep.subr.bf16.mxu0 0
        %1051 = vmatpush1.bf16.msra.mxu0 0
        %1052 = vmatprep.subr.bf16.mxu0 0
        %1053 = vmatpush1.bf16.msra.mxu0 0
        %1054 = vmatprep.subr.bf16.mxu0 0
        %1055 = vmatpush1.bf16.msra.mxu0 0
        %1056 = vmatprep.subr.bf16.mxu0 0
        %1057 = vmatpush1.bf16.msra.mxu0 0
        %1058 = vmatprep.subr.bf16.mxu0 0
        %1059 = vmatpush1.bf16.msra.mxu0 0
        %1060 = vmatprep.subr.bf16.mxu0 0
        %1061 = vmatpush1.bf16.msra.mxu0 0
        %1062 = vmatprep.subr.bf16.mxu0 0
        %1063 = vmatpush1.bf16.msra.mxu0 0
        %1064 = vmatprep.subr.bf16.mxu0 0
        %1065 = vmatpush1.bf16.msra.mxu0 0
        %1066 = vmatprep.subr.bf16.mxu0 0
        %1067 = vmatpush1.bf16.msra.mxu0 0
        %1068 = vmatprep.subr.bf16.mxu0 0
        %1069 = vmatpush1.bf16.msra.mxu0 0
        %1070 = vmatprep.mubr.bf16.mxu0 0
        %1071 = vmatmul.mubr.bf16.gmra.mrb[0].mxu0 %v1033
        %v1072 = vpop.f32.mrb[0].mxu0
        %v1073 = vadd.f32 0.0, %v1072
        %v1074 = vpop.f32.mrb[0].mxu0
        %v1075 = vpop.f32.mrb[0].mxu0
        %v1076 = vpop.f32.mrb[0].mxu0
        %1077 = vdwg.mxu0
        %1078 = vrot.lane.b32.xlu0 %v856, 120
        %v1079 = vpop.permute.xlu0 %1078
        %1080 = vrot.lane.b32.xlu0 %v856, 88
        %v1081 = vpop.permute.xlu0 %1080
        %v1083 = vsel %vm861, %v1079, 0
        %v1086 = vsel %vm861, %v1081, 0
        %1088 = vmatprep.subr.bf16.mxu0 0
        %1089 = vmatpush1.bf16.xpose.msra.mxu0 %v1086
        %1090 = vmatprep.subr.bf16.mxu0 0
        %1091 = vmatpush1.bf16.xpose.msra.mxu0 0
        %1092 = vmatprep.subr.bf16.mxu0 0
        %1093 = vmatpush1.bf16.xpose.msra.mxu0 0
        %1094 = vmatprep.subr.bf16.mxu0 0
        %1095 = vmatpush1.bf16.xpose.msra.mxu0 0
        %1096 = vmatprep.subr.bf16.mxu0 0
        %1097 = vmatpush1.bf16.xpose.msra.mxu0 0
        %1098 = vmatprep.subr.bf16.mxu0 0
        %1099 = vmatpush1.bf16.xpose.msra.mxu0 0
        %1100 = vmatprep.subr.bf16.mxu0 0
        %1101 = vmatpush1.bf16.xpose.msra.mxu0 0
        %1102 = vmatprep.subr.bf16.mxu0 0
        %1103 = vmatpush1.bf16.xpose.msra.mxu0 0
        %1104 = vmatprep.subr.bf16.mxu0 0
        %1105 = vmatpush1.bf16.xpose.msra.mxu0 0
        %1106 = vmatprep.subr.bf16.mxu0 0
        %1107 = vmatpush1.bf16.xpose.msra.mxu0 0
        %1108 = vmatprep.subr.bf16.mxu0 0
        %1109 = vmatpush1.bf16.xpose.msra.mxu0 0
        %1110 = vmatprep.subr.bf16.mxu0 0
        %1111 = vmatpush1.bf16.xpose.msra.mxu0 0
        %1112 = vmatprep.subr.bf16.mxu0 0
        %1113 = vmatpush1.bf16.xpose.msra.mxu0 0
        %1114 = vmatprep.subr.bf16.mxu0 0
        %1115 = vmatpush1.bf16.xpose.msra.mxu0 0
        %1116 = vmatprep.subr.bf16.mxu0 0
        %1117 = vmatpush1.bf16.xpose.msra.mxu0 0
        %1118 = vmatprep.subr.bf16.mxu0 0
        %1119 = vmatpush1.bf16.xpose.msra.mxu0 0
        %1120 = vmatprep.mubr.bf16.mxu0 0
        %1121 = vmatmul.mubr.bf16.gmra.mrb[0].mxu0 %v1083
        %v1122 = vpop.f32.mrb[0].mxu0
        %v1123 = vadd.f32 %v855, %v1122
        %v1124 = vpop.f32.mrb[0].mxu0
        %v1125 = vpop.f32.mrb[0].mxu0
        %v1126 = vpop.f32.mrb[0].mxu0
        %1127 = vdwg.mxu0
        %1128 = vrot.lane.b32.xlu0 %v857, 120
        %v1129 = vpop.permute.xlu0 %1128
        %1130 = vrot.lane.b32.xlu0 %v857, 88
        %v1131 = vpop.permute.xlu0 %1130
        %v1133 = vsel %vm861, %v1129, 0
        %v1136 = vsel %vm861, %v1131, 0
        %1138 = vmatprep.subr.bf16.mxu0 0
        %1139 = vmatpush1.bf16.xpose.msra.mxu0 %v1136
        %1140 = vmatprep.subr.bf16.mxu0 0
        %1141 = vmatpush1.bf16.xpose.msra.mxu0 0
        %1142 = vmatprep.subr.bf16.mxu0 0
        %1143 = vmatpush1.bf16.xpose.msra.mxu0 0
        %1144 = vmatprep.subr.bf16.mxu0 0
        %1145 = vmatpush1.bf16.xpose.msra.mxu0 0
        %1146 = vmatprep.subr.bf16.mxu0 0
        %1147 = vmatpush1.bf16.xpose.msra.mxu0 0
        %1148 = vmatprep.subr.bf16.mxu0 0
        %1149 = vmatpush1.bf16.xpose.msra.mxu0 0
        %1150 = vmatprep.subr.bf16.mxu0 0
        %1151 = vmatpush1.bf16.xpose.msra.mxu0 0
        %1152 = vmatprep.subr.bf16.mxu0 0
        %1153 = vmatpush1.bf16.xpose.msra.mxu0 0
        %1154 = vmatprep.subr.bf16.mxu0 0
        %1155 = vmatpush1.bf16.xpose.msra.mxu0 0
        %1156 = vmatprep.subr.bf16.mxu0 0
        %1157 = vmatpush1.bf16.xpose.msra.mxu0 0
        %1158 = vmatprep.subr.bf16.mxu0 0
        %1159 = vmatpush1.bf16.xpose.msra.mxu0 0
        %1160 = vmatprep.subr.bf16.mxu0 0
        %1161 = vmatpush1.bf16.xpose.msra.mxu0 0
        %1162 = vmatprep.subr.bf16.mxu0 0
        %1163 = vmatpush1.bf16.xpose.msra.mxu0 0
        %1164 = vmatprep.subr.bf16.mxu0 0
        %1165 = vmatpush1.bf16.xpose.msra.mxu0 0
        %1166 = vmatprep.subr.bf16.mxu0 0
        %1167 = vmatpush1.bf16.xpose.msra.mxu0 0
        %1168 = vmatprep.subr.bf16.mxu0 0
        %1169 = vmatpush1.bf16.xpose.msra.mxu0 0
        %1170 = vmatprep.mubr.bf16.mxu0 0
        %1171 = vmatmul.mubr.bf16.gmra.mrb[0].mxu0 %v1133
        %v1172 = vpop.f32.mrb[0].mxu0
        %v1173 = vadd.f32 %v855, %v1172
        %v1174 = vpop.f32.mrb[0].mxu0
        %v1175 = vpop.f32.mrb[0].mxu0
        %v1176 = vpop.f32.mrb[0].mxu0
        %1177 = vdwg.mxu0
        %v1178 = vsel %vm861, %v1123, -inf
        %1179 = vmax.xlane.f32.xlu0 %v1178
        %v1180 = vpop.xlane.xlu0 %1179
        %v1181 = vsel %vm861, %v1173, -inf
        %1182 = vmax.xlane.f32.xlu0 %v1181
        %v1183 = vpop.xlane.xlu0 %1182
        %v1184 = vsub.f32 %v1123, %v1180
        %v1185 = vsub.f32 %v1173, %v1183
        %v1186 = vmul.f32 %v1184, 1.442695
        %v1187 = vpow.pop %v1186
        %v1188 = vmul.f32 %v1185, 1.442695
        %v1189 = vpow.pop %v1188
        %v1190 = vsel %vm861, %v1187, 0.0
        %1191 = vadd.xlane.f32.xlu0 %v1190
        %v1192 = vpop.xlane.xlu0 %1191
        %v1193 = vsel %vm861, %v1189, 0.0
        %1194 = vadd.xlane.f32.xlu0 %v1193
        %v1195 = vpop.xlane.xlu0 %1194
        %v1196 = vrcp.pop %v1192
        %v1197 = vmul.f32 %v1187, %v1196
        %v1198 = vrcp.pop %v1195
        %v1199 = vmul.f32 %v1189, %v1198
        %v1200 = vpack.c.bf16 %v1197, %v1197
        %v1201 = vpack.c.bf16 %v1199, %v1199
        %1202 = vrot.lane.b32.xlu0 %v856, 56
        %v1203 = vpop.permute.xlu0 %1202
        %v1205 = vsel %vm861, %v1200, 0
        %v1208 = vsel %vm986, %v1203, 0
        %1210 = vmatprep.subr.bf16.mxu0 0
        %1211 = vmatpush1.bf16.msra.mxu0 %v1208
        %1212 = vmatprep.subr.bf16.mxu0 0
        %1213 = vmatpush1.bf16.msra.mxu0 0
        %1214 = vmatprep.subr.bf16.mxu0 0
        %1215 = vmatpush1.bf16.msra.mxu0 0
        %1216 = vmatprep.subr.bf16.mxu0 0
        %1217 = vmatpush1.bf16.msra.mxu0 0
        %1218 = vmatprep.subr.bf16.mxu0 0
        %1219 = vmatpush1.bf16.msra.mxu0 0
        %1220 = vmatprep.subr.bf16.mxu0 0
        %1221 = vmatpush1.bf16.msra.mxu0 0
        %1222 = vmatprep.subr.bf16.mxu0 0
        %1223 = vmatpush1.bf16.msra.mxu0 0
        %1224 = vmatprep.subr.bf16.mxu0 0
        %1225 = vmatpush1.bf16.msra.mxu0 0
        %1226 = vmatprep.subr.bf16.mxu0 0
        %1227 = vmatpush1.bf16.msra.mxu0 0
        %1228 = vmatprep.subr.bf16.mxu0 0
        %1229 = vmatpush1.bf16.msra.mxu0 0
        %1230 = vmatprep.subr.bf16.mxu0 0
        %1231 = vmatpush1.bf16.msra.mxu0 0
        %1232 = vmatprep.subr.bf16.mxu0 0
        %1233 = vmatpush1.bf16.msra.mxu0 0
        %1234 = vmatprep.subr.bf16.mxu0 0
        %1235 = vmatpush1.bf16.msra.mxu0 0
        %1236 = vmatprep.subr.bf16.mxu0 0
        %1237 = vmatpush1.bf16.msra.mxu0 0
        %1238 = vmatprep.subr.bf16.mxu0 0
        %1239 = vmatpush1.bf16.msra.mxu0 0
        %1240 = vmatprep.subr.bf16.mxu0 0
        %1241 = vmatpush1.bf16.msra.mxu0 0
        %1242 = vmatprep.mubr.bf16.mxu0 0
        %1243 = vmatmul.mubr.bf16.gmra.mrb[0].mxu0 %v1205
        %v1244 = vpop.f32.mrb[0].mxu0
        %v1245 = vadd.f32 0.0, %v1244
        %v1246 = vpop.f32.mrb[0].mxu0
        %v1247 = vpop.f32.mrb[0].mxu0
        %v1248 = vpop.f32.mrb[0].mxu0
        %1249 = vdwg.mxu0
        %1250 = vrot.lane.b32.xlu0 %v857, 56
        %v1251 = vpop.permute.xlu0 %1250
        %v1253 = vsel %vm861, %v1201, 0
        %v1256 = vsel %vm986, %v1251, 0
        %1258 = vmatprep.subr.bf16.mxu0 0
        %1259 = vmatpush1.bf16.msra.mxu0 %v1256
        %1260 = vmatprep.subr.bf16.mxu0 0
        %1261 = vmatpush1.bf16.msra.mxu0 0
        %1262 = vmatprep.subr.bf16.mxu0 0
        %1263 = vmatpush1.bf16.msra.mxu0 0
        %1264 = vmatprep.subr.bf16.mxu0 0
        %1265 = vmatpush1.bf16.msra.mxu0 0
        %1266 = vmatprep.subr.bf16.mxu0 0
        %1267 = vmatpush1.bf16.msra.mxu0 0
        %1268 = vmatprep.subr.bf16.mxu0 0
        %1269 = vmatpush1.bf16.msra.mxu0 0
        %1270 = vmatprep.subr.bf16.mxu0 0
        %1271 = vmatpush1.bf16.msra.mxu0 0
        %1272 = vmatprep.subr.bf16.mxu0 0
        %1273 = vmatpush1.bf16.msra.mxu0 0
        %1274 = vmatprep.subr.bf16.mxu0 0
        %1275 = vmatpush1.bf16.msra.mxu0 0
        %1276 = vmatprep.subr.bf16.mxu0 0
        %1277 = vmatpush1.bf16.msra.mxu0 0
        %1278 = vmatprep.subr.bf16.mxu0 0
        %1279 = vmatpush1.bf16.msra.mxu0 0
        %1280 = vmatprep.subr.bf16.mxu0 0
        %1281 = vmatpush1.bf16.msra.mxu0 0
        %1282 = vmatprep.subr.bf16.mxu0 0
        %1283 = vmatpush1.bf16.msra.mxu0 0
        %1284 = vmatprep.subr.bf16.mxu0 0
        %1285 = vmatpush1.bf16.msra.mxu0 0
        %1286 = vmatprep.subr.bf16.mxu0 0
        %1287 = vmatpush1.bf16.msra.mxu0 0
        %1288 = vmatprep.subr.bf16.mxu0 0
        %1289 = vmatpush1.bf16.msra.mxu0 0
        %1290 = vmatprep.mubr.bf16.mxu0 0
        %1291 = vmatmul.mubr.bf16.gmra.mrb[0].mxu0 %v1253
        %v1292 = vpop.f32.mrb[0].mxu0
        %v1293 = vadd.f32 0.0, %v1292
        %v1294 = vpop.f32.mrb[0].mxu0
        %v1295 = vpop.f32.mrb[0].mxu0
        %v1296 = vpop.f32.mrb[0].mxu0
        %1297 = vdwg.mxu0
        %1298 = vrot.lane.b32.xlu0 %v856, 112
        %v1299 = vpop.permute.xlu0 %1298
        %1300 = vrot.lane.b32.xlu0 %v856, 80
        %v1301 = vpop.permute.xlu0 %1300
        %v1303 = vsel %vm861, %v1299, 0
        %v1306 = vsel %vm861, %v1301, 0
        %1308 = vmatprep.subr.bf16.mxu0 0
        %1309 = vmatpush1.bf16.xpose.msra.mxu0 %v1306
        %1310 = vmatprep.subr.bf16.mxu0 0
        %1311 = vmatpush1.bf16.xpose.msra.mxu0 0
        %1312 = vmatprep.subr.bf16.mxu0 0
        %1313 = vmatpush1.bf16.xpose.msra.mxu0 0
        %1314 = vmatprep.subr.bf16.mxu0 0
        %1315 = vmatpush1.bf16.xpose.msra.mxu0 0
        %1316 = vmatprep.subr.bf16.mxu0 0
        %1317 = vmatpush1.bf16.xpose.msra.mxu0 0
        %1318 = vmatprep.subr.bf16.mxu0 0
        %1319 = vmatpush1.bf16.xpose.msra.mxu0 0
        %1320 = vmatprep.subr.bf16.mxu0 0
        %1321 = vmatpush1.bf16.xpose.msra.mxu0 0
        %1322 = vmatprep.subr.bf16.mxu0 0
        %1323 = vmatpush1.bf16.xpose.msra.mxu0 0
        %1324 = vmatprep.subr.bf16.mxu0 0
        %1325 = vmatpush1.bf16.xpose.msra.mxu0 0
        %1326 = vmatprep.subr.bf16.mxu0 0
        %1327 = vmatpush1.bf16.xpose.msra.mxu0 0
        %1328 = vmatprep.subr.bf16.mxu0 0
        %1329 = vmatpush1.bf16.xpose.msra.mxu0 0
        %1330 = vmatprep.subr.bf16.mxu0 0
        %1331 = vmatpush1.bf16.xpose.msra.mxu0 0
        %1332 = vmatprep.subr.bf16.mxu0 0
        %1333 = vmatpush1.bf16.xpose.msra.mxu0 0
        %1334 = vmatprep.subr.bf16.mxu0 0
        %1335 = vmatpush1.bf16.xpose.msra.mxu0 0
        %1336 = vmatprep.subr.bf16.mxu0 0
        %1337 = vmatpush1.bf16.xpose.msra.mxu0 0
        %1338 = vmatprep.subr.bf16.mxu0 0
        %1339 = vmatpush1.bf16.xpose.msra.mxu0 0
        %1340 = vmatprep.mubr.bf16.mxu0 0
        %1341 = vmatmul.mubr.bf16.gmra.mrb[0].mxu0 %v1303
        %v1342 = vpop.f32.mrb[0].mxu0
        %v1343 = vadd.f32 %v855, %v1342
        %v1344 = vpop.f32.mrb[0].mxu0
        %v1345 = vpop.f32.mrb[0].mxu0
        %v1346 = vpop.f32.mrb[0].mxu0
        %1347 = vdwg.mxu0
        %1348 = vrot.lane.b32.xlu0 %v857, 112
        %v1349 = vpop.permute.xlu0 %1348
        %1350 = vrot.lane.b32.xlu0 %v857, 80
        %v1351 = vpop.permute.xlu0 %1350
        %v1353 = vsel %vm861, %v1349, 0
        %v1356 = vsel %vm861, %v1351, 0
        %1358 = vmatprep.subr.bf16.mxu0 0
        %1359 = vmatpush1.bf16.xpose.msra.mxu0 %v1356
        %1360 = vmatprep.subr.bf16.mxu0 0
        %1361 = vmatpush1.bf16.xpose.msra.mxu0 0
        %1362 = vmatprep.subr.bf16.mxu0 0
        %1363 = vmatpush1.bf16.xpose.msra.mxu0 0
        %1364 = vmatprep.subr.bf16.mxu0 0
        %1365 = vmatpush1.bf16.xpose.msra.mxu0 0
        %1366 = vmatprep.subr.bf16.mxu0 0
        %1367 = vmatpush1.bf16.xpose.msra.mxu0 0
        %1368 = vmatprep.subr.bf16.mxu0 0
        %1369 = vmatpush1.bf16.xpose.msra.mxu0 0
        %1370 = vmatprep.subr.bf16.mxu0 0
        %1371 = vmatpush1.bf16.xpose.msra.mxu0 0
        %1372 = vmatprep.subr.bf16.mxu0 0
        %1373 = vmatpush1.bf16.xpose.msra.mxu0 0
        %1374 = vmatprep.subr.bf16.mxu0 0
        %1375 = vmatpush1.bf16.xpose.msra.mxu0 0
        %1376 = vmatprep.subr.bf16.mxu0 0
        %1377 = vmatpush1.bf16.xpose.msra.mxu0 0
        %1378 = vmatprep.subr.bf16.mxu0 0
        %1379 = vmatpush1.bf16.xpose.msra.mxu0 0
        %1380 = vmatprep.subr.bf16.mxu0 0
        %1381 = vmatpush1.bf16.xpose.msra.mxu0 0
        %1382 = vmatprep.subr.bf16.mxu0 0
        %1383 = vmatpush1.bf16.xpose.msra.mxu0 0
        %1384 = vmatprep.subr.bf16.mxu0 0
        %1385 = vmatpush1.bf16.xpose.msra.mxu0 0
        %1386 = vmatprep.subr.bf16.mxu0 0
        %1387 = vmatpush1.bf16.xpose.msra.mxu0 0
        %1388 = vmatprep.subr.bf16.mxu0 0
        %1389 = vmatpush1.bf16.xpose.msra.mxu0 0
        %1390 = vmatprep.mubr.bf16.mxu0 0
        %1391 = vmatmul.mubr.bf16.gmra.mrb[0].mxu0 %v1353
        %v1392 = vpop.f32.mrb[0].mxu0
        %v1393 = vadd.f32 %v855, %v1392
        %v1394 = vpop.f32.mrb[0].mxu0
        %v1395 = vpop.f32.mrb[0].mxu0
        %v1396 = vpop.f32.mrb[0].mxu0
        %1397 = vdwg.mxu0
        %v1398 = vsel %vm861, %v1343, -inf
        %1399 = vmax.xlane.f32.xlu0 %v1398
        %v1400 = vpop.xlane.xlu0 %1399
        %v1401 = vsel %vm861, %v1393, -inf
        %1402 = vmax.xlane.f32.xlu0 %v1401
        %v1403 = vpop.xlane.xlu0 %1402
        %v1404 = vsub.f32 %v1343, %v1400
        %v1405 = vsub.f32 %v1393, %v1403
        %v1406 = vmul.f32 %v1404, 1.442695
        %v1407 = vpow.pop %v1406
        %v1408 = vmul.f32 %v1405, 1.442695
        %v1409 = vpow.pop %v1408
        %v1410 = vsel %vm861, %v1407, 0.0
        %1411 = vadd.xlane.f32.xlu0 %v1410
        %v1412 = vpop.xlane.xlu0 %1411
        %v1413 = vsel %vm861, %v1409, 0.0
        %1414 = vadd.xlane.f32.xlu0 %v1413
        %v1415 = vpop.xlane.xlu0 %1414
        %v1416 = vrcp.pop %v1412
        %v1417 = vmul.f32 %v1407, %v1416
        %v1418 = vrcp.pop %v1415
        %v1419 = vmul.f32 %v1409, %v1418
        %v1420 = vpack.c.bf16 %v1417, %v1417
        %v1421 = vpack.c.bf16 %v1419, %v1419
        %1422 = vrot.lane.b32.xlu0 %v856, 48
        %v1423 = vpop.permute.xlu0 %1422
        %v1425 = vsel %vm861, %v1420, 0
        %v1428 = vsel %vm986, %v1423, 0
        %1430 = vmatprep.subr.bf16.mxu0 0
        %1431 = vmatpush1.bf16.msra.mxu0 %v1428
        %1432 = vmatprep.subr.bf16.mxu0 0
        %1433 = vmatpush1.bf16.msra.mxu0 0
        %1434 = vmatprep.subr.bf16.mxu0 0
        %1435 = vmatpush1.bf16.msra.mxu0 0
        %1436 = vmatprep.subr.bf16.mxu0 0
        %1437 = vmatpush1.bf16.msra.mxu0 0
        %1438 = vmatprep.subr.bf16.mxu0 0
        %1439 = vmatpush1.bf16.msra.mxu0 0
        %1440 = vmatprep.subr.bf16.mxu0 0
        %1441 = vmatpush1.bf16.msra.mxu0 0
        %1442 = vmatprep.subr.bf16.mxu0 0
        %1443 = vmatpush1.bf16.msra.mxu0 0
        %1444 = vmatprep.subr.bf16.mxu0 0
        %1445 = vmatpush1.bf16.msra.mxu0 0
        %1446 = vmatprep.subr.bf16.mxu0 0
        %1447 = vmatpush1.bf16.msra.mxu0 0
        %1448 = vmatprep.subr.bf16.mxu0 0
        %1449 = vmatpush1.bf16.msra.mxu0 0
        %1450 = vmatprep.subr.bf16.mxu0 0
        %1451 = vmatpush1.bf16.msra.mxu0 0
        %1452 = vmatprep.subr.bf16.mxu0 0
        %1453 = vmatpush1.bf16.msra.mxu0 0
        %1454 = vmatprep.subr.bf16.mxu0 0
        %1455 = vmatpush1.bf16.msra.mxu0 0
        %1456 = vmatprep.subr.bf16.mxu0 0
        %1457 = vmatpush1.bf16.msra.mxu0 0
        %1458 = vmatprep.subr.bf16.mxu0 0
        %1459 = vmatpush1.bf16.msra.mxu0 0
        %1460 = vmatprep.subr.bf16.mxu0 0
        %1461 = vmatpush1.bf16.msra.mxu0 0
        %1462 = vmatprep.mubr.bf16.mxu0 0
        %1463 = vmatmul.mubr.bf16.gmra.mrb[0].mxu0 %v1425
        %v1464 = vpop.f32.mrb[0].mxu0
        %v1465 = vadd.f32 0.0, %v1464
        %v1466 = vpop.f32.mrb[0].mxu0
        %v1467 = vpop.f32.mrb[0].mxu0
        %v1468 = vpop.f32.mrb[0].mxu0
        %1469 = vdwg.mxu0
        %1470 = vrot.lane.b32.xlu0 %v857, 48
        %v1471 = vpop.permute.xlu0 %1470
        %v1473 = vsel %vm861, %v1421, 0
        %v1476 = vsel %vm986, %v1471, 0
        %1478 = vmatprep.subr.bf16.mxu0 0
        %1479 = vmatpush1.bf16.msra.mxu0 %v1476
        %1480 = vmatprep.subr.bf16.mxu0 0
        %1481 = vmatpush1.bf16.msra.mxu0 0
        %1482 = vmatprep.subr.bf16.mxu0 0
        %1483 = vmatpush1.bf16.msra.mxu0 0
        %1484 = vmatprep.subr.bf16.mxu0 0
        %1485 = vmatpush1.bf16.msra.mxu0 0
        %1486 = vmatprep.subr.bf16.mxu0 0
        %1487 = vmatpush1.bf16.msra.mxu0 0
        %1488 = vmatprep.subr.bf16.mxu0 0
        %1489 = vmatpush1.bf16.msra.mxu0 0
        %1490 = vmatprep.subr.bf16.mxu0 0
        %1491 = vmatpush1.bf16.msra.mxu0 0
        %1492 = vmatprep.subr.bf16.mxu0 0
        %1493 = vmatpush1.bf16.msra.mxu0 0
        %1494 = vmatprep.subr.bf16.mxu0 0
        %1495 = vmatpush1.bf16.msra.mxu0 0
        %1496 = vmatprep.subr.bf16.mxu0 0
        %1497 = vmatpush1.bf16.msra.mxu0 0
        %1498 = vmatprep.subr.bf16.mxu0 0
        %1499 = vmatpush1.bf16.msra.mxu0 0
        %1500 = vmatprep.subr.bf16.mxu0 0
        %1501 = vmatpush1.bf16.msra.mxu0 0
        %1502 = vmatprep.subr.bf16.mxu0 0
        %1503 = vmatpush1.bf16.msra.mxu0 0
        %1504 = vmatprep.subr.bf16.mxu0 0
        %1505 = vmatpush1.bf16.msra.mxu0 0
        %1506 = vmatprep.subr.bf16.mxu0 0
        %1507 = vmatpush1.bf16.msra.mxu0 0
        %1508 = vmatprep.subr.bf16.mxu0 0
        %1509 = vmatpush1.bf16.msra.mxu0 0
        %1510 = vmatprep.mubr.bf16.mxu0 0
        %1511 = vmatmul.mubr.bf16.gmra.mrb[0].mxu0 %v1473
        %v1512 = vpop.f32.mrb[0].mxu0
        %v1513 = vadd.f32 0.0, %v1512
        %v1514 = vpop.f32.mrb[0].mxu0
        %v1515 = vpop.f32.mrb[0].mxu0
        %v1516 = vpop.f32.mrb[0].mxu0
        %1517 = vdwg.mxu0
        %1518 = vrot.lane.b32.xlu0 %v856, 104
        %v1519 = vpop.permute.xlu0 %1518
        %1520 = vrot.lane.b32.xlu0 %v856, 72
        %v1521 = vpop.permute.xlu0 %1520
        %v1523 = vsel %vm861, %v1519, 0
        %v1526 = vsel %vm861, %v1521, 0
        %1528 = vmatprep.subr.bf16.mxu0 0
        %1529 = vmatpush1.bf16.xpose.msra.mxu0 %v1526
        %1530 = vmatprep.subr.bf16.mxu0 0
        %1531 = vmatpush1.bf16.xpose.msra.mxu0 0
        %1532 = vmatprep.subr.bf16.mxu0 0
        %1533 = vmatpush1.bf16.xpose.msra.mxu0 0
        %1534 = vmatprep.subr.bf16.mxu0 0
        %1535 = vmatpush1.bf16.xpose.msra.mxu0 0
        %1536 = vmatprep.subr.bf16.mxu0 0
        %1537 = vmatpush1.bf16.xpose.msra.mxu0 0
        %1538 = vmatprep.subr.bf16.mxu0 0
        %1539 = vmatpush1.bf16.xpose.msra.mxu0 0
        %1540 = vmatprep.subr.bf16.mxu0 0
        %1541 = vmatpush1.bf16.xpose.msra.mxu0 0
        %1542 = vmatprep.subr.bf16.mxu0 0
        %1543 = vmatpush1.bf16.xpose.msra.mxu0 0
        %1544 = vmatprep.subr.bf16.mxu0 0
        %1545 = vmatpush1.bf16.xpose.msra.mxu0 0
        %1546 = vmatprep.subr.bf16.mxu0 0
        %1547 = vmatpush1.bf16.xpose.msra.mxu0 0
        %1548 = vmatprep.subr.bf16.mxu0 0
        %1549 = vmatpush1.bf16.xpose.msra.mxu0 0
        %1550 = vmatprep.subr.bf16.mxu0 0
        %1551 = vmatpush1.bf16.xpose.msra.mxu0 0
        %1552 = vmatprep.subr.bf16.mxu0 0
        %1553 = vmatpush1.bf16.xpose.msra.mxu0 0
        %1554 = vmatprep.subr.bf16.mxu0 0
        %1555 = vmatpush1.bf16.xpose.msra.mxu0 0
        %1556 = vmatprep.subr.bf16.mxu0 0
        %1557 = vmatpush1.bf16.xpose.msra.mxu0 0
        %1558 = vmatprep.subr.bf16.mxu0 0
        %1559 = vmatpush1.bf16.xpose.msra.mxu0 0
        %1560 = vmatprep.mubr.bf16.mxu0 0
        %1561 = vmatmul.mubr.bf16.gmra.mrb[0].mxu0 %v1523
        %v1562 = vpop.f32.mrb[0].mxu0
        %v1563 = vadd.f32 %v855, %v1562
        %v1564 = vpop.f32.mrb[0].mxu0
        %v1565 = vpop.f32.mrb[0].mxu0
        %v1566 = vpop.f32.mrb[0].mxu0
        %1567 = vdwg.mxu0
        %1568 = vrot.lane.b32.xlu0 %v857, 104
        %v1569 = vpop.permute.xlu0 %1568
        %1570 = vrot.lane.b32.xlu0 %v857, 72
        %v1571 = vpop.permute.xlu0 %1570
        %v1573 = vsel %vm861, %v1569, 0
        %v1576 = vsel %vm861, %v1571, 0
        %1578 = vmatprep.subr.bf16.mxu0 0
        %1579 = vmatpush1.bf16.xpose.msra.mxu0 %v1576
        %1580 = vmatprep.subr.bf16.mxu0 0
        %1581 = vmatpush1.bf16.xpose.msra.mxu0 0
        %1582 = vmatprep.subr.bf16.mxu0 0
        %1583 = vmatpush1.bf16.xpose.msra.mxu0 0
        %1584 = vmatprep.subr.bf16.mxu0 0
        %1585 = vmatpush1.bf16.xpose.msra.mxu0 0
        %1586 = vmatprep.subr.bf16.mxu0 0
        %1587 = vmatpush1.bf16.xpose.msra.mxu0 0
        %1588 = vmatprep.subr.bf16.mxu0 0
        %1589 = vmatpush1.bf16.xpose.msra.mxu0 0
        %1590 = vmatprep.subr.bf16.mxu0 0
        %1591 = vmatpush1.bf16.xpose.msra.mxu0 0
        %1592 = vmatprep.subr.bf16.mxu0 0
        %1593 = vmatpush1.bf16.xpose.msra.mxu0 0
        %1594 = vmatprep.subr.bf16.mxu0 0
        %1595 = vmatpush1.bf16.xpose.msra.mxu0 0
        %1596 = vmatprep.subr.bf16.mxu0 0
        %1597 = vmatpush1.bf16.xpose.msra.mxu0 0
        %1598 = vmatprep.subr.bf16.mxu0 0
        %1599 = vmatpush1.bf16.xpose.msra.mxu0 0
        %1600 = vmatprep.subr.bf16.mxu0 0
        %1601 = vmatpush1.bf16.xpose.msra.mxu0 0
        %1602 = vmatprep.subr.bf16.mxu0 0
        %1603 = vmatpush1.bf16.xpose.msra.mxu0 0
        %1604 = vmatprep.subr.bf16.mxu0 0
        %1605 = vmatpush1.bf16.xpose.msra.mxu0 0
        %1606 = vmatprep.subr.bf16.mxu0 0
        %1607 = vmatpush1.bf16.xpose.msra.mxu0 0
        %1608 = vmatprep.subr.bf16.mxu0 0
        %1609 = vmatpush1.bf16.xpose.msra.mxu0 0
        %1610 = vmatprep.mubr.bf16.mxu0 0
        %1611 = vmatmul.mubr.bf16.gmra.mrb[0].mxu0 %v1573
        %v1612 = vpop.f32.mrb[0].mxu0
        %v1613 = vadd.f32 %v855, %v1612
        %v1614 = vpop.f32.mrb[0].mxu0
        %v1615 = vpop.f32.mrb[0].mxu0
        %v1616 = vpop.f32.mrb[0].mxu0
        %1617 = vdwg.mxu0
        %v1618 = vsel %vm861, %v1563, -inf
        %1619 = vmax.xlane.f32.xlu0 %v1618
        %v1620 = vpop.xlane.xlu0 %1619
        %v1621 = vsel %vm861, %v1613, -inf
        %1622 = vmax.xlane.f32.xlu0 %v1621
        %v1623 = vpop.xlane.xlu0 %1622
        %v1624 = vsub.f32 %v1563, %v1620
        %v1625 = vsub.f32 %v1613, %v1623
        %v1626 = vmul.f32 %v1624, 1.442695
        %v1627 = vpow.pop %v1626
        %v1628 = vmul.f32 %v1625, 1.442695
        %v1629 = vpow.pop %v1628
        %v1630 = vsel %vm861, %v1627, 0.0
        %1631 = vadd.xlane.f32.xlu0 %v1630
        %v1632 = vpop.xlane.xlu0 %1631
        %v1633 = vsel %vm861, %v1629, 0.0
        %1634 = vadd.xlane.f32.xlu0 %v1633
        %v1635 = vpop.xlane.xlu0 %1634
        %v1636 = vrcp.pop %v1632
        %v1637 = vmul.f32 %v1627, %v1636
        %v1638 = vrcp.pop %v1635
        %v1639 = vmul.f32 %v1629, %v1638
        %v1640 = vpack.c.bf16 %v1637, %v1637
        %v1641 = vpack.c.bf16 %v1639, %v1639
        %1642 = vrot.lane.b32.xlu0 %v856, 40
        %v1643 = vpop.permute.xlu0 %1642
        %v1645 = vsel %vm861, %v1640, 0
        %v1648 = vsel %vm986, %v1643, 0
        %1650 = vmatprep.subr.bf16.mxu0 0
        %1651 = vmatpush1.bf16.msra.mxu0 %v1648
        %1652 = vmatprep.subr.bf16.mxu0 0
        %1653 = vmatpush1.bf16.msra.mxu0 0
        %1654 = vmatprep.subr.bf16.mxu0 0
        %1655 = vmatpush1.bf16.msra.mxu0 0
        %1656 = vmatprep.subr.bf16.mxu0 0
        %1657 = vmatpush1.bf16.msra.mxu0 0
        %1658 = vmatprep.subr.bf16.mxu0 0
        %1659 = vmatpush1.bf16.msra.mxu0 0
        %1660 = vmatprep.subr.bf16.mxu0 0
        %1661 = vmatpush1.bf16.msra.mxu0 0
        %1662 = vmatprep.subr.bf16.mxu0 0
        %1663 = vmatpush1.bf16.msra.mxu0 0
        %1664 = vmatprep.subr.bf16.mxu0 0
        %1665 = vmatpush1.bf16.msra.mxu0 0
        %1666 = vmatprep.subr.bf16.mxu0 0
        %1667 = vmatpush1.bf16.msra.mxu0 0
        %1668 = vmatprep.subr.bf16.mxu0 0
        %1669 = vmatpush1.bf16.msra.mxu0 0
        %1670 = vmatprep.subr.bf16.mxu0 0
        %1671 = vmatpush1.bf16.msra.mxu0 0
        %1672 = vmatprep.subr.bf16.mxu0 0
        %1673 = vmatpush1.bf16.msra.mxu0 0
        %1674 = vmatprep.subr.bf16.mxu0 0
        %1675 = vmatpush1.bf16.msra.mxu0 0
        %1676 = vmatprep.subr.bf16.mxu0 0
        %1677 = vmatpush1.bf16.msra.mxu0 0
        %1678 = vmatprep.subr.bf16.mxu0 0
        %1679 = vmatpush1.bf16.msra.mxu0 0
        %1680 = vmatprep.subr.bf16.mxu0 0
        %1681 = vmatpush1.bf16.msra.mxu0 0
        %1682 = vmatprep.mubr.bf16.mxu0 0
        %1683 = vmatmul.mubr.bf16.gmra.mrb[0].mxu0 %v1645
        %v1684 = vpop.f32.mrb[0].mxu0
        %v1685 = vadd.f32 0.0, %v1684
        %v1686 = vpop.f32.mrb[0].mxu0
        %v1687 = vpop.f32.mrb[0].mxu0
        %v1688 = vpop.f32.mrb[0].mxu0
        %1689 = vdwg.mxu0
        %1690 = vrot.lane.b32.xlu0 %v857, 40
        %v1691 = vpop.permute.xlu0 %1690
        %v1693 = vsel %vm861, %v1641, 0
        %v1696 = vsel %vm986, %v1691, 0
        %1698 = vmatprep.subr.bf16.mxu0 0
        %1699 = vmatpush1.bf16.msra.mxu0 %v1696
        %1700 = vmatprep.subr.bf16.mxu0 0
        %1701 = vmatpush1.bf16.msra.mxu0 0
        %1702 = vmatprep.subr.bf16.mxu0 0
        %1703 = vmatpush1.bf16.msra.mxu0 0
        %1704 = vmatprep.subr.bf16.mxu0 0
        %1705 = vmatpush1.bf16.msra.mxu0 0
        %1706 = vmatprep.subr.bf16.mxu0 0
        %1707 = vmatpush1.bf16.msra.mxu0 0
        %1708 = vmatprep.subr.bf16.mxu0 0
        %1709 = vmatpush1.bf16.msra.mxu0 0
        %1710 = vmatprep.subr.bf16.mxu0 0
        %1711 = vmatpush1.bf16.msra.mxu0 0
        %1712 = vmatprep.subr.bf16.mxu0 0
        %1713 = vmatpush1.bf16.msra.mxu0 0
        %1714 = vmatprep.subr.bf16.mxu0 0
        %1715 = vmatpush1.bf16.msra.mxu0 0
        %1716 = vmatprep.subr.bf16.mxu0 0
        %1717 = vmatpush1.bf16.msra.mxu0 0
        %1718 = vmatprep.subr.bf16.mxu0 0
        %1719 = vmatpush1.bf16.msra.mxu0 0
        %1720 = vmatprep.subr.bf16.mxu0 0
        %1721 = vmatpush1.bf16.msra.mxu0 0
        %1722 = vmatprep.subr.bf16.mxu0 0
        %1723 = vmatpush1.bf16.msra.mxu0 0
        %1724 = vmatprep.subr.bf16.mxu0 0
        %1725 = vmatpush1.bf16.msra.mxu0 0
        %1726 = vmatprep.subr.bf16.mxu0 0
        %1727 = vmatpush1.bf16.msra.mxu0 0
        %1728 = vmatprep.subr.bf16.mxu0 0
        %1729 = vmatpush1.bf16.msra.mxu0 0
        %1730 = vmatprep.mubr.bf16.mxu0 0
        %1731 = vmatmul.mubr.bf16.gmra.mrb[0].mxu0 %v1693
        %v1732 = vpop.f32.mrb[0].mxu0
        %v1733 = vadd.f32 0.0, %v1732
        %v1734 = vpop.f32.mrb[0].mxu0
        %v1735 = vpop.f32.mrb[0].mxu0
        %v1736 = vpop.f32.mrb[0].mxu0
        %1737 = vdwg.mxu0
        %1740 = vrot.lane.b32.xlu0 %v1245, 8
        %v1741 = vpop.permute.xlu0 %1740
        %1742 = vrot.lane.b32.xlu0 %v1293, 8
        %v1743 = vpop.permute.xlu0 %1742
        %1748 = vrot.lane.b32.xlu0 %v1465, 16
        %v1749 = vpop.permute.xlu0 %1748
        %1750 = vrot.lane.b32.xlu0 %v1513, 16
        %v1751 = vpop.permute.xlu0 %1750
        %1756 = vrot.lane.b32.xlu0 %v1685, 24
        %v1757 = vpop.permute.xlu0 %1756
        %1758 = vrot.lane.b32.xlu0 %v1733, 24
        %v1759 = vpop.permute.xlu0 %1758
        %v1762 = vsel %vm861, %v1025, %v1741
        %v1763 = vsel %vm861, %v1073, %v1743
        %vm1764 = vcmask 130048
        %v1765 = vsel %vm1764, %v1762, %v1749
        %v1766 = vsel %vm1764, %v1763, %v1751
        %vm1767 = vcmask 195584
        %v1768 = vsel %vm1767, %v1765, %v1757
        %v1769 = vsel %vm1767, %v1766, %v1759
        %v1770 = vpack.c.bf16 %v1769, %v1768
        %v1771 = vld [vmem:[%s679] sm:$0xf]
        %v1772 = vld [vmem:[%s679 + $0x4] sm:$0xf]
        %v1773 = vld [vmem:[%s679 + $0x8] sm:$0xf]
        %v1774 = vld [vmem:[%s679 + $0xc] sm:$0xf]
        %v1775 = vld [vmem:[%s682] sm:$0x1]
        %v1777 = vlaneseq
        %v1778 = vshrl.u32 %v1777, 7
        %v1779 = vsub.s32 0, %v1778
        %v1780 = vrot.slane %v1775, %v1779
        %v1786 = vunpack.c.l.b16 %v1771
        %v1787 = vunpack.c.l.b16 %v1772
        %v1788 = vunpack.c.l.b16 %v1773
        %v1789 = vunpack.c.l.b16 %v1774
        %v1790 = vpack.c.b16 %v1787, %v1786
        %v1791 = vpack.c.b16 %v1789, %v1788
        %v1793 = vsel %vm792, %v1770, 0
        %v1796 = vsel %vm792, %v1790, 0
        %v1799 = vsel %vm792, %v1791, 0
        %1801 = vmatprep.subr.bf16.mxu0 0
        %1802 = vmatpush1.bf16.xpose.msra.mxu0 %v1796
        %1803 = vmatprep.subr.bf16.mxu0 0
        %1804 = vmatpush1.bf16.xpose.msra.mxu0 %v1799
        %1805 = vmatprep.subr.bf16.mxu0 0
        %1806 = vmatpush1.bf16.xpose.msra.mxu0 0
        %1807 = vmatprep.subr.bf16.mxu0 0
        %1808 = vmatpush1.bf16.xpose.msra.mxu0 0
        %1809 = vmatprep.subr.bf16.mxu0 0
        %1810 = vmatpush1.bf16.xpose.msra.mxu0 0
        %1811 = vmatprep.subr.bf16.mxu0 0
        %1812 = vmatpush1.bf16.xpose.msra.mxu0 0
        %1813 = vmatprep.subr.bf16.mxu0 0
        %1814 = vmatpush1.bf16.xpose.msra.mxu0 0
        %1815 = vmatprep.subr.bf16.mxu0 0
        %1816 = vmatpush1.bf16.xpose.msra.mxu0 0
        %1817 = vmatprep.subr.bf16.mxu0 0
        %1818 = vmatpush1.bf16.xpose.msra.mxu0 0
        %1819 = vmatprep.subr.bf16.mxu0 0
        %1820 = vmatpush1.bf16.xpose.msra.mxu0 0
        %1821 = vmatprep.subr.bf16.mxu0 0
        %1822 = vmatpush1.bf16.xpose.msra.mxu0 0
        %1823 = vmatprep.subr.bf16.mxu0 0
        %1824 = vmatpush1.bf16.xpose.msra.mxu0 0
        %1825 = vmatprep.subr.bf16.mxu0 0
        %1826 = vmatpush1.bf16.xpose.msra.mxu0 0
        %1827 = vmatprep.subr.bf16.mxu0 0
        %1828 = vmatpush1.bf16.xpose.msra.mxu0 0
        %1829 = vmatprep.subr.bf16.mxu0 0
        %1830 = vmatpush1.bf16.xpose.msra.mxu0 0
        %1831 = vmatprep.subr.bf16.mxu0 0
        %1832 = vmatpush1.bf16.xpose.msra.mxu0 0
        %1833 = vmatprep.mubr.bf16.mxu0 0
        %1834 = vmatmul.mubr.bf16.gmra.mrb[0].mxu0 %v1793
        %v1835 = vpop.f32.mrb[0].mxu0
        %v1836 = vadd.f32 %v1780, %v1835
        %v1837 = vpop.f32.mrb[0].mxu0
        %v1838 = vpop.f32.mrb[0].mxu0
        %v1839 = vadd.f32 %v1780, %v1838
        %v1840 = vpop.f32.mrb[0].mxu0
        %1841 = vdwg.mxu0
        %v1842 = vadd.f32 %v740, %v1836
        %v1843 = vadd.f32 %v741, %v1839
        %v1844 = vld [vmem:[%s685] sm:$0x1]
        %v1845 = vld [vmem:[%s688] sm:$0x1]
        %v1846 = vsel %vm792, %v1842, 0.0
        %1847 = vadd.xlane.f32.xlu0 %v1846
        %v1848 = vpop.xlane.xlu0 %1847
        %v1849 = vsel %vm792, %v1843, 0.0
        %1850 = vadd.xlane.f32.xlu0 %v1849
        %v1851 = vpop.xlane.xlu0 %1850
        %v1852 = vrcp.pop 32.0
        %v1853 = vmul.f32 %v1848, %v1852
        %v1854 = vmul.f32 %v1851, %v1852
        %v1855 = vsub.f32 %v1842, %v1853
        %v1856 = vsub.f32 %v1843, %v1854
        %v1857 = vmul.f32 %v1855, %v1855
        %v1858 = vmul.f32 %v1856, %v1856
        %v1859 = vsel %vm792, %v1857, 0.0
        %1860 = vadd.xlane.f32.xlu0 %v1859
        %v1861 = vpop.xlane.xlu0 %1860
        %v1862 = vsel %vm792, %v1858, 0.0
        %1863 = vadd.xlane.f32.xlu0 %v1862
        %v1864 = vpop.xlane.xlu0 %1863
        %v1865 = vmul.f32 %v1861, %v1852
        %v1866 = vmul.f32 %v1864, %v1852
        %v1867 = vadd.f32 %v1865, 1e-05
        %v1868 = vadd.f32 %v1866, 1e-05
        %v1869 = vrsqrt.pop %v1867
        %v1870 = vrsqrt.pop %v1868
        %v1871 = vmul.f32 %v1855, %v1869
        %v1872 = vmul.f32 %v1856, %v1870
        %v1874 = vlaneseq
        %v1875 = vshrl.u32 %v1874, 7
        %v1876 = vsub.s32 0, %v1875
        %v1877 = vrot.slane %v1844, %v1876
        %v1879 = vmul.f32 %v1871, %v1877
        %v1880 = vmul.f32 %v1872, %v1877
        %v1882 = vlaneseq
        %v1883 = vshrl.u32 %v1882, 7
        %v1884 = vsub.s32 0, %v1883
        %v1885 = vrot.slane %v1845, %v1884
        %v1887 = vadd.f32 %v1879, %v1885
        %v1888 = vadd.f32 %v1880, %v1885
        %v1889 = vpack.c.bf16 %v1888, %v1887
        %v1890 = vld [vmem:[%s693] sm:$0xf]
        %v1891 = vld [vmem:[%s693 + $0x4] sm:$0xf]
        %v1892 = vld [vmem:[%s693 + $0x8] sm:$0xf]
        %v1893 = vld [vmem:[%s693 + $0xc] sm:$0xf]
        %v1894 = vld [vmem:[%s693 + $0x10] sm:$0xf]
        %v1895 = vld [vmem:[%s693 + $0x14] sm:$0xf]
        %v1896 = vld [vmem:[%s693 + $0x18] sm:$0xf]
        %v1897 = vld [vmem:[%s693 + $0x1c] sm:$0xf]
        %v1898 = vld [vmem:[%s696] sm:$0x1]
        %v1900 = vlaneseq
        %v1901 = vshrl.u32 %v1900, 7
        %v1902 = vsub.s32 0, %v1901
        %v1903 = vrot.slane %v1898, %v1902
        %v1913 = vunpack.c.l.b16 %v1890
        %v1914 = vunpack.c.l.b16 %v1891
        %v1915 = vunpack.c.l.b16 %v1892
        %v1916 = vunpack.c.l.b16 %v1893
        %v1917 = vunpack.c.l.b16 %v1894
        %v1918 = vunpack.c.l.b16 %v1895
        %v1919 = vunpack.c.l.b16 %v1896
        %v1920 = vunpack.c.l.b16 %v1897
        %v1921 = vpack.c.b16 %v1914, %v1913
        %v1922 = vpack.c.b16 %v1916, %v1915
        %v1923 = vpack.c.b16 %v1918, %v1917
        %v1924 = vpack.c.b16 %v1920, %v1919
        %v1926 = vsel %vm792, %v1889, 0
        %v1929 = vsel %vm792, %v1921, 0
        %v1932 = vsel %vm792, %v1922, 0
        %v1935 = vsel %vm792, %v1923, 0
        %v1938 = vsel %vm792, %v1924, 0
        %1940 = vmatprep.subr.bf16.mxu0 0
        %1941 = vmatpush1.bf16.xpose.msra.mxu0 %v1929
        %1942 = vmatprep.subr.bf16.mxu0 0
        %1943 = vmatpush1.bf16.xpose.msra.mxu0 %v1932
        %1944 = vmatprep.subr.bf16.mxu0 0
        %1945 = vmatpush1.bf16.xpose.msra.mxu0 %v1935
        %1946 = vmatprep.subr.bf16.mxu0 0
        %1947 = vmatpush1.bf16.xpose.msra.mxu0 %v1938
        %1948 = vmatprep.subr.bf16.mxu0 0
        %1949 = vmatpush1.bf16.xpose.msra.mxu0 0
        %1950 = vmatprep.subr.bf16.mxu0 0
        %1951 = vmatpush1.bf16.xpose.msra.mxu0 0
        %1952 = vmatprep.subr.bf16.mxu0 0
        %1953 = vmatpush1.bf16.xpose.msra.mxu0 0
        %1954 = vmatprep.subr.bf16.mxu0 0
        %1955 = vmatpush1.bf16.xpose.msra.mxu0 0
        %1956 = vmatprep.subr.bf16.mxu0 0
        %1957 = vmatpush1.bf16.xpose.msra.mxu0 0
        %1958 = vmatprep.subr.bf16.mxu0 0
        %1959 = vmatpush1.bf16.xpose.msra.mxu0 0
        %1960 = vmatprep.subr.bf16.mxu0 0
        %1961 = vmatpush1.bf16.xpose.msra.mxu0 0
        %1962 = vmatprep.subr.bf16.mxu0 0
        %1963 = vmatpush1.bf16.xpose.msra.mxu0 0
        %1964 = vmatprep.subr.bf16.mxu0 0
        %1965 = vmatpush1.bf16.xpose.msra.mxu0 0
        %1966 = vmatprep.subr.bf16.mxu0 0
        %1967 = vmatpush1.bf16.xpose.msra.mxu0 0
        %1968 = vmatprep.subr.bf16.mxu0 0
        %1969 = vmatpush1.bf16.xpose.msra.mxu0 0
        %1970 = vmatprep.subr.bf16.mxu0 0
        %1971 = vmatpush1.bf16.xpose.msra.mxu0 0
        %1972 = vmatprep.mubr.bf16.mxu0 0
        %1973 = vmatmul.mubr.bf16.gmra.mrb[0].mxu0 %v1926
        %v1974 = vpop.f32.mrb[0].mxu0
        %v1975 = vadd.f32 %v1903, %v1974
        %v1976 = vpop.f32.mrb[0].mxu0
        %v1977 = vpop.f32.mrb[0].mxu0
        %v1978 = vadd.f32 %v1903, %v1977
        %v1979 = vpop.f32.mrb[0].mxu0
        %1980 = vdwg.mxu0
        %v1981 = vmax.f32 %v1975, 0.0
        %v1982 = vmax.f32 %v1978, 0.0
        %v1983 = vpack.c.bf16 %v1982, %v1981
        %v1984 = vld [vmem:[%s701] sm:$0xf]
        %v1985 = vld [vmem:[%s701 + $0x4] sm:$0xf]
        %v1986 = vld [vmem:[%s701 + $0x8] sm:$0xf]
        %v1987 = vld [vmem:[%s701 + $0xc] sm:$0xf]
        %v1988 = vld [vmem:[%s704] sm:$0x1]
        %v1990 = vlaneseq
        %v1991 = vshrl.u32 %v1990, 7
        %v1992 = vsub.s32 0, %v1991
        %v1993 = vrot.slane %v1988, %v1992
        %v1999 = vunpack.c.l.b16 %v1984
        %v2000 = vunpack.c.l.b16 %v1985
        %v2001 = vunpack.c.l.b16 %v1986
        %v2002 = vunpack.c.l.b16 %v1987
        %v2003 = vpack.c.b16 %v2000, %v1999
        %v2004 = vpack.c.b16 %v2002, %v2001
        %vm2005 = vcmask 523264
        %v2007 = vsel %vm2005, %v1983, 0
        %v2010 = vsel %vm2005, %v2003, 0
        %v2013 = vsel %vm2005, %v2004, 0
        %2015 = vmatprep.subr.bf16.mxu0 0
        %2016 = vmatpush1.bf16.xpose.msra.mxu0 %v2010
        %2017 = vmatprep.subr.bf16.mxu0 0
        %2018 = vmatpush1.bf16.xpose.msra.mxu0 %v2013
        %2019 = vmatprep.subr.bf16.mxu0 0
        %2020 = vmatpush1.bf16.xpose.msra.mxu0 0
        %2021 = vmatprep.subr.bf16.mxu0 0
        %2022 = vmatpush1.bf16.xpose.msra.mxu0 0
        %2023 = vmatprep.subr.bf16.mxu0 0
        %2024 = vmatpush1.bf16.xpose.msra.mxu0 0
        %2025 = vmatprep.subr.bf16.mxu0 0
        %2026 = vmatpush1.bf16.xpose.msra.mxu0 0
        %2027 = vmatprep.subr.bf16.mxu0 0
        %2028 = vmatpush1.bf16.xpose.msra.mxu0 0
        %2029 = vmatprep.subr.bf16.mxu0 0
        %2030 = vmatpush1.bf16.xpose.msra.mxu0 0
        %2031 = vmatprep.subr.bf16.mxu0 0
        %2032 = vmatpush1.bf16.xpose.msra.mxu0 0
        %2033 = vmatprep.subr.bf16.mxu0 0
        %2034 = vmatpush1.bf16.xpose.msra.mxu0 0
        %2035 = vmatprep.subr.bf16.mxu0 0
        %2036 = vmatpush1.bf16.xpose.msra.mxu0 0
        %2037 = vmatprep.subr.bf16.mxu0 0
        %2038 = vmatpush1.bf16.xpose.msra.mxu0 0
        %2039 = vmatprep.subr.bf16.mxu0 0
        %2040 = vmatpush1.bf16.xpose.msra.mxu0 0
        %2041 = vmatprep.subr.bf16.mxu0 0
        %2042 = vmatpush1.bf16.xpose.msra.mxu0 0
        %2043 = vmatprep.subr.bf16.mxu0 0
        %2044 = vmatpush1.bf16.xpose.msra.mxu0 0
        %2045 = vmatprep.subr.bf16.mxu0 0
        %2046 = vmatpush1.bf16.xpose.msra.mxu0 0
        %2047 = vmatprep.mubr.bf16.mxu0 0
        %2048 = vmatmul.mubr.bf16.gmra.mrb[0].mxu0 %v2007
        %v2049 = vpop.f32.mrb[0].mxu0
        %v2050 = vadd.f32 %v1993, %v2049
        %v2051 = vpop.f32.mrb[0].mxu0
        %v2052 = vpop.f32.mrb[0].mxu0
        %v2053 = vadd.f32 %v1993, %v2052
        %v2054 = vpop.f32.mrb[0].mxu0
        %2055 = vdwg.mxu0
        %v2056 = vadd.f32 %v1887, %v2050
        %v2057 = vadd.f32 %v1888, %v2053
        %v2058 = vld [vmem:[%s707] sm:$0x1]
        %v2059 = vld [vmem:[%s710] sm:$0x1]
        %v2060 = vsel %vm792, %v2056, 0.0
        %2061 = vadd.xlane.f32.xlu0 %v2060
        %v2062 = vpop.xlane.xlu0 %2061
        %v2063 = vsel %vm792, %v2057, 0.0
        %2064 = vadd.xlane.f32.xlu0 %v2063
        %v2065 = vpop.xlane.xlu0 %2064
        %v2066 = vmul.f32 %v2062, %v1852
        %v2067 = vmul.f32 %v2065, %v1852
        %v2068 = vsub.f32 %v2056, %v2066
        %v2069 = vsub.f32 %v2057, %v2067
        %v2070 = vmul.f32 %v2068, %v2068
        %v2071 = vmul.f32 %v2069, %v2069
        %v2072 = vsel %vm792, %v2070, 0.0
        %2073 = vadd.xlane.f32.xlu0 %v2072
        %v2074 = vpop.xlane.xlu0 %2073
        %v2075 = vsel %vm792, %v2071, 0.0
        %2076 = vadd.xlane.f32.xlu0 %v2075
        %v2077 = vpop.xlane.xlu0 %2076
        %v2078 = vmul.f32 %v2074, %v1852
        %v2079 = vmul.f32 %v2077, %v1852
        %v2080 = vadd.f32 %v2078, 1e-05
        %v2081 = vadd.f32 %v2079, 1e-05
        %v2082 = vrsqrt.pop %v2080
        %v2083 = vrsqrt.pop %v2081
        %v2084 = vmul.f32 %v2068, %v2082
        %v2085 = vmul.f32 %v2069, %v2083
        %v2087 = vlaneseq
        %v2088 = vshrl.u32 %v2087, 7
        %v2089 = vsub.s32 0, %v2088
        %v2090 = vrot.slane %v2058, %v2089
        %v2092 = vmul.f32 %v2084, %v2090
        %v2093 = vmul.f32 %v2085, %v2090
        %v2095 = vlaneseq
        %v2096 = vshrl.u32 %v2095, 7
        %v2097 = vsub.s32 0, %v2096
        %v2098 = vrot.slane %v2059, %v2097
        %v2100 = vadd.f32 %v2092, %v2098
        %v2101 = vadd.f32 %v2093, %v2098
        %2102 = vst.msk [vmem:[#allocation2] sm:$0xff] %vm792, %v2100
        %2103 = vst.msk [vmem:[#allocation2 + $0x8] sm:$0xff] %vm792, %v2101
        %p2104 = scmp.eq.s32.totalorder %s32, 1
        // Predicated region
        $region85: #{tpu_custom_call.1} parent=79 // pred_check
          %p2105 = pneg %p2104
        $region86: #{tpu_custom_call.1} parent=79 // pred_check_branch
          %2107 = sbr.rel (%p2105) target = $region88
        $region87: #{tpu_custom_call.1} parent=79 // pred_region
          %2108 = vst.msk [vmem:[#allocation3] sm:$0xff] %vm792, %v2100
          %2109 = vst.msk [vmem:[#allocation3 + $0x8] sm:$0xff] %vm792, %v2101
        $region88: #{tpu_custom_call.1} parent=79 // pred_fallthru
          _
        // Predicated region
        $region89: #{tpu_custom_call.1} parent=79 // pred_check
          %p2110 = pneg %p442
        $region90: #{tpu_custom_call.1} parent=79 // pred_check_branch
          %2112 = sbr.rel (%p2110) target = $region92
        $region91: #{tpu_custom_call.1} parent=79 // pred_region
          %s2113 = smul.u32 2, %s31
          %s2115 = ssub.s32 256, 256
          %2116 = vsyncadd [#allocation4], %s2115
          %s2117 = smul.addr %s2113, 128
          %s2118 = scalar_lea.hbm %s15, %s2117
          %s2119 = sshll.u32 [#allocation3], 4
          %s2120 = int_to_ptr.vmem [resolvable:$true] %s2119
          %2125 = dma.vmem_to_hbm [thread:$0]  %s2120, 256, %s2118, [#allocation4], 128, 128, 8
        $region92: #{tpu_custom_call.1} parent=79 // pred_fallthru
          _
        // Predicated region
        $region93: #{tpu_custom_call.1} parent=79 // pred_check
          %p2126 = pneg %p442
        $region94: #{tpu_custom_call.1} parent=79 // pred_check_branch
          %2128 = sbr.rel (%p2126) target = $region96
        $region95: #{tpu_custom_call.1} parent=79 // pred_region
          %2129 = dma.done [#allocation4], 256
        $region96: #{tpu_custom_call.1} parent=79 // pred_fallthru
          _
      $region80: #{tpu_custom_call.1} parent=5 // pred_fallthru
        _
      %p2130 = scmp.le.s32.totalorder 2, %s22
      // Predicated region
      $region97: #{tpu_custom_call.1} parent=5 // pred_check
        %p2131 = pneg %p2130
      $region98: #{tpu_custom_call.1} parent=5 // pred_check_branch
        %2133 = sbr.rel (%p2131) target = $region100
      $region99: #{tpu_custom_call.1} parent=5 // pred_region
        %s2134 = ssub.s32 %s22, 2
      $region100: #{tpu_custom_call.1} parent=5 // pred_fallthru
        _
    $region6: #{tpu_custom_call.1} parent=1 // loop_footer
      %s26 = sadd.s32 1, %s22
    $region7: #{tpu_custom_call.1} parent=1 // loop_footer_branch
      %21 = sbr.rel target = $region3
    $region8: #{tpu_custom_call.1} parent=1 // loop_exit
      _
    %2135 = vsyncpa [#allocation4], 1
    %s2136 = scalar_lea.sflag [#allocation4], 1
    %2137 = vsyncpa %s2136, 1

</llo_original>
